<compile_context>
chip_gen: v7x
topology: tpu7x:2x2x1
jax: 0.10.0
libtpu: 0.0.40
codegen_flags: <defaults>
</compile_context>

<pallas_src>
import functools

import jax
import jax.numpy as jnp
from jax.experimental import pallas as pl
from jax.experimental.pallas import tpu as pltpu


# ----------------------------- fused Pallas kernel ---------------------------

def fused_vlmrag_kernel(
    img_ref,      # (B, C*H*W) f32 activations
    tok_ref,      # (B, S, 1)  int32 query token ids
    emb_ref,      # (VOCAB_IN, E) f32 token embedding table
    img_w_ref,    # (C*H*W, D) bf16
    txt_w_ref,    # (E, D)     bf16
    proj_w_ref,   # (2D, Dr)   bf16   rows: [text | image]
    mem_ref,      # (M, Dr)    bf16   memory bank
    mem_t_ref,    # (Dr, M)    bf16   pre-transposed memory bank (scores)
    fus_w_ref,    # (2D+2Dr, DF) bf16 rows: [text | image | retrieved | projected]
    dec_w_ref,    # (DF, V_out) bf16
    bias_ref,     # (1, D+D+Dr+DF+V_out) f32 packed biases
    out_ref,      # (B, V_out) f32
    *, merge_k,
):
    f32, bf16 = jnp.float32, jnp.bfloat16

    B, S, _ = tok_ref.shape
    V_in, E = emb_ref.shape
    D = img_w_ref.shape[1]
    Dr = mem_ref.shape[1]
    DF = fus_w_ref.shape[1]
    V_out = dec_w_ref.shape[1]

    # --- packed-bias views (static, 128-lane-aligned slices) ------------------
    img_b = bias_ref[:, 0:D]
    txt_b = bias_ref[:, D:2 * D]
    proj_b = bias_ref[:, 2 * D:2 * D + Dr]
    fus_b = bias_ref[:, 2 * D + Dr:2 * D + Dr + DF]
    dec_b = bias_ref[:, 2 * D + Dr + DF:2 * D + Dr + DF + V_out]

    # --- TextEncoder: in-kernel token gather + mean-pool ----------------------
    # mean_s emb[tok[b,s]]  ==  (mean_s onehot[b,s,:]) @ emb   (one small matmul,
    # no dynamic gather, no host-side jnp.take / jnp.mean glue ops)
    tok = tok_ref[...]                                                  # (B,S,1)
    vocab_ids = jax.lax.broadcasted_iota(jnp.int32, (B, S, V_in), 2)
    onehot = (tok == vocab_ids).astype(f32)                             # (B,S,V)
    pool_w = jnp.sum(onehot, axis=1) * (1.0 / S)                        # (B,V)
    pooled = jnp.dot(pool_w, emb_ref[...],
                     preferred_element_type=f32)                        # (B,E) f32
    txt_e = jnp.tanh(jnp.dot(pooled.astype(bf16), txt_w_ref[...],
                             preferred_element_type=f32) + txt_b)       # (B,D)

    # --- ImageEncoder: tanh(img_flat @ Wi + bi) --------------------------------
    img_in = img_ref[...].astype(bf16)                                  # VPU cast
    img_e = jnp.tanh(jnp.dot(img_in, img_w_ref[...],
                             preferred_element_type=f32) + img_b)       # (B,D)

    txt_b16 = txt_e.astype(bf16)
    img_b16 = img_e.astype(bf16)

    # --- Retriever projection: tanh(cat([txt, img]) @ Wp + b) ------------------
    if merge_k:
        # v6e/v7x: one K=2D matmul matching the 256-deep MXU (lane-aligned concat)
        ti = jnp.concatenate([txt_b16, img_b16], axis=-1)               # (B,2D)
        proj = jnp.dot(ti, proj_w_ref[...], preferred_element_type=f32)
    else:
        # v5e: split K=128 dots overlap on the 4 independent 128x128 MXUs
        proj = (jnp.dot(txt_b16, proj_w_ref[0:D, :], preferred_element_type=f32)
                + jnp.dot(img_b16, proj_w_ref[D:2 * D, :],
                          preferred_element_type=f32))
    proj = jnp.tanh(proj + proj_b)                                      # (B,Dr)
    proj_b16 = proj.astype(bf16)

    # --- Soft attention over memory bank (pre-transposed RHS, no XLU xpose) ---
    scores = jnp.dot(proj_b16, mem_t_ref[...],
                     preferred_element_type=f32)                        # (B,M)
    m = jnp.max(scores, axis=-1, keepdims=True)
    p = jnp.exp(scores - m)
    denom = jnp.sum(p, axis=-1, keepdims=True)
    attn = p * pl.reciprocal(denom, approx=False)                       # exact softmax
    # keep attention weights in f32 for the retrieval matmul (review item)
    retrieved = jnp.dot(attn, mem_ref[...].astype(f32),
                        preferred_element_type=f32)                     # (B,Dr)
    retr_b16 = retrieved.astype(bf16)

    # --- Fusion: tanh(cat([txt, img, retr, proj]) @ Wf + b) --------------------
    if merge_k:
        timrp = jnp.concatenate([txt_b16, img_b16, retr_b16, proj_b16],
                                axis=-1)                                # (B,2D+2Dr)
        fused = jnp.dot(timrp, fus_w_ref[...], preferred_element_type=f32)
    else:
        fused = (jnp.dot(txt_b16, fus_w_ref[0:D, :], preferred_element_type=f32)
                 + jnp.dot(img_b16, fus_w_ref[D:2 * D, :],
                           preferred_element_type=f32)
                 + jnp.dot(retr_b16, fus_w_ref[2 * D:2 * D + Dr, :],
                           preferred_element_type=f32)
                 + jnp.dot(proj_b16, fus_w_ref[2 * D + Dr:2 * D + 2 * Dr, :],
                           preferred_element_type=f32))
    fused = jnp.tanh(fused + fus_b)                                     # (B,DF)

    # --- Decoder: logits --------------------------------------------------------
    logits = jnp.dot(fused.astype(bf16), dec_w_ref[...],
                     preferred_element_type=f32) + dec_b                # (B,V_out)
    out_ref[...] = logits.astype(out_ref.dtype)


# ------------------------------ wrapper ---------------------------------------

_VMEM = pl.BlockSpec(memory_space=pltpu.MemorySpace.VMEM)


def _wide_k_supported():
    """Merge split-K dots into wide-K matmuls on v6e/v7x; keep splits on v5e."""
    try:
        kind = jax.devices()[0].device_kind.lower()
    except Exception:
        return True
    return not any(s in kind for s in ("v5 lite", "v5lite", "v5e"))


_MERGE_K = _wide_k_supported()


def pallas_vlmrag_fused(img_flat, tok_ids, params):
    B = img_flat.shape[0]
    vocab_out = params["dec_w"].shape[1]
    kern = functools.partial(fused_vlmrag_kernel, merge_k=_MERGE_K)
    n_inputs = 11
    return pl.pallas_call(
        kern,
        out_shape=jax.ShapeDtypeStruct((B, vocab_out), jnp.float32),
        in_specs=[_VMEM] * n_inputs,
        out_specs=_VMEM,
    )(
        img_flat, tok_ids,
        params["tok_emb"],
        params["img_w"], params["txt_w"],
        params["proj_w"],
        params["memory"], params["memory_t"],
        params["fus_w"],
        params["dec_w"],
        params["bias_pack"],
    )


# ------------------------------ model ------------------------------------------

def init_param(key, shape, scale=0.02):
    return scale * jax.random.normal(key, shape, dtype=jnp.float32)


def make_params(key):
    (k_img_w, k_img_b, k_emb, k_txt_w, k_txt_b, k_proj_w, k_proj_b,
     k_mem, k_fus_w, k_fus_b, k_dec_w, k_dec_b) = jax.random.split(key, 12)

    C, H, W = 4, 16, 16
    D = 128            # shared embedding dim for image / text encoders
    E = 32             # token embedding dim
    VOCAB_IN = 64      # input vocab (query tokens)
    Dr = 128           # retrieval space dim
    M = 16             # memory bank size
    DF = 128           # fused dim
    VOCAB_OUT = 256    # decoder output dim (logits)

    bf16 = jnp.bfloat16

    proj_w = init_param(k_proj_w, (2 * D, Dr))           # rows: [text | image]
    fus_w = init_param(k_fus_w, (2 * D + 2 * Dr, DF))    # [text|image|retr|proj]
    memory = init_param(k_mem, (M, Dr), scale=1.0)

    img_b = init_param(k_img_b, (1, D))
    txt_b = init_param(k_txt_b, (1, D))
    proj_b = init_param(k_proj_b, (1, Dr))
    fus_b = init_param(k_fus_b, (1, DF))
    dec_b = init_param(k_dec_b, (1, VOCAB_OUT))
    # single packed f32 bias buffer: [img_b | txt_b | proj_b | fus_b | dec_b]
    bias_pack = jnp.concatenate([img_b, txt_b, proj_b, fus_b, dec_b], axis=1)

    params = {
        # weights bf16 (MXU-native, half the DMA bytes); biases / embed table f32
        "img_w": init_param(k_img_w, (C * H * W, D)).astype(bf16),
        "tok_emb": init_param(k_emb, (VOCAB_IN, E)),
        "txt_w": init_param(k_txt_w, (E, D)).astype(bf16),
        "proj_w": proj_w.astype(bf16),
        "memory": memory.astype(bf16),
        "memory_t": memory.T.astype(bf16),   # pre-transposed for the score matmul
        "fus_w": fus_w.astype(bf16),
        "dec_w": init_param(k_dec_w, (DF, VOCAB_OUT)).astype(bf16),
        "bias_pack": bias_pack,
    }
    return params


def vlmrag_forward(params, image_nchw, query_tokens):
    B = image_nchw.shape[0]
    # Only free reshapes remain outside the kernel; casts / gather / pooling are
    # all done inside the fused Pallas kernel.
    img_flat = image_nchw.reshape(B, -1)                        # (B, C*H*W) f32
    tok_ids = query_tokens.reshape(B, query_tokens.shape[1], 1)  # (B, S, 1) i32
    return pallas_vlmrag_fused(img_flat, tok_ids, params)       # (B, VOCAB_OUT)


# ------------------------------ main ------------------------------------------

if __name__ == "__main__":
    key = jax.random.PRNGKey(0)
    k_params, k_img, k_tok = jax.random.split(key, 3)

    params = make_params(k_params)

    B, C, H, W = 2, 4, 16, 16
    SEQ = 8
    image = jax.random.normal(k_img, (B, C, H, W), dtype=jnp.float32)   # NCHW
    query_tokens = jax.random.randint(k_tok, (B, SEQ), 0, 64, dtype=jnp.int32)

    out = jax.jit(vlmrag_forward)(params, image, query_tokens)
    jax.block_until_ready(out)

    assert out.shape == (B, 256), out.shape
    assert bool(jnp.all(jnp.isfinite(out)))
    print("KERNEL_OK")
</pallas_src>

<mosaic_0001>
module attributes {stable_mosaic.version = 11 : i64} {
  func.func @fused_vlmrag_kernel(%arg0: memref<2x1024xf32, #tpu.memory_space<vmem>>, %arg1: memref<2x8x1xi32, #tpu.memory_space<vmem>>, %arg2: memref<64x32xf32, #tpu.memory_space<vmem>>, %arg3: memref<1024x128xbf16, #tpu.memory_space<vmem>>, %arg4: memref<32x128xbf16, #tpu.memory_space<vmem>>, %arg5: memref<256x128xbf16, #tpu.memory_space<vmem>>, %arg6: memref<16x128xbf16, #tpu.memory_space<vmem>>, %arg7: memref<128x16xbf16, #tpu.memory_space<vmem>>, %arg8: memref<512x128xbf16, #tpu.memory_space<vmem>>, %arg9: memref<128x256xbf16, #tpu.memory_space<vmem>>, %arg10: memref<1x768xf32, #tpu.memory_space<vmem>>, %arg11: memref<2x256xf32, #tpu.memory_space<vmem>>) attributes {dimension_semantics = [], scalar_prefetch = 0 : i64, scratch_operands = 0 : i64, tpu.core_type = #tpu.core_type<tc>} {
    %c0 = arith.constant 0 : index
    %c0_0 = arith.constant 0 : index
    %0 = vector.load %arg10[%c0, %c0_0] : memref<1x768xf32, #tpu.memory_space<vmem>>, vector<1x128xf32>
    %c0_1 = arith.constant 0 : index
    %c128 = arith.constant 128 : index
    %1 = vector.load %arg10[%c0_1, %c128] : memref<1x768xf32, #tpu.memory_space<vmem>>, vector<1x128xf32>
    %c0_2 = arith.constant 0 : index
    %c256 = arith.constant 256 : index
    %2 = vector.load %arg10[%c0_2, %c256] : memref<1x768xf32, #tpu.memory_space<vmem>>, vector<1x128xf32>
    %c0_3 = arith.constant 0 : index
    %c384 = arith.constant 384 : index
    %3 = vector.load %arg10[%c0_3, %c384] : memref<1x768xf32, #tpu.memory_space<vmem>>, vector<1x128xf32>
    %c0_4 = arith.constant 0 : index
    %c512 = arith.constant 512 : index
    %4 = vector.load %arg10[%c0_4, %c512] : memref<1x768xf32, #tpu.memory_space<vmem>>, vector<1x256xf32>
    %c0_5 = arith.constant 0 : index
    %c0_6 = arith.constant 0 : index
    %c0_7 = arith.constant 0 : index
    %5 = vector.load %arg1[%c0_5, %c0_6, %c0_7] : memref<2x8x1xi32, #tpu.memory_space<vmem>>, vector<2x8x1xi32>
    %6 = tpu.iota {dimensions = array<i32: 2>} : vector<2x8x64xi32>
    %7 = vector.broadcast %5 : vector<2x8x1xi32> to vector<2x8x64xi32>
    %8 = arith.cmpi eq, %7, %6 : vector<2x8x64xi32>
    %9 = arith.extui %8 : vector<2x8x64xi1> to vector<2x8x64xi32>
    %10 = arith.sitofp %9 : vector<2x8x64xi32> to vector<2x8x64xf32>
    %cst = arith.constant dense<0.000000e+00> : vector<2x64xf32>
    %11 = vector.multi_reduction <add>, %10, %cst [1] : vector<2x8x64xf32> to vector<2x64xf32>
    %cst_8 = arith.constant 1.250000e-01 : f32
    %12 = vector.broadcast %cst_8 : f32 to vector<2x64xf32>
    %13 = arith.mulf %11, %12 : vector<2x64xf32>
    %c0_9 = arith.constant 0 : index
    %c0_10 = arith.constant 0 : index
    %14 = vector.load %arg2[%c0_9, %c0_10] : memref<64x32xf32, #tpu.memory_space<vmem>>, vector<64x32xf32>
    %cst_11 = arith.constant dense<0.000000e+00> : vector<2x32xf32>
    %15 = tpu.matmul %13, %14, %cst_11 {dimension_numbers = #tpu.dot_dimension_numbers<[1], [0], [0], [1], [0, 0, 1, 1], [], []>} : vector<2x64xf32>, vector<64x32xf32>, vector<2x32xf32> -> vector<2x32xf32>
    %16 = arith.truncf %15 : vector<2x32xf32> to vector<2x32xbf16>
    %c0_12 = arith.constant 0 : index
    %c0_13 = arith.constant 0 : index
    %17 = vector.load %arg4[%c0_12, %c0_13] : memref<32x128xbf16, #tpu.memory_space<vmem>>, vector<32x128xbf16>
    %cst_14 = arith.constant dense<0.000000e+00> : vector<2x128xf32>
    %18 = tpu.matmul %16, %17, %cst_14 {dimension_numbers = #tpu.dot_dimension_numbers<[1], [0], [0], [1], [0, 0, 1, 1], [], []>} : vector<2x32xbf16>, vector<32x128xbf16>, vector<2x128xf32> -> vector<2x128xf32>
    %19 = vector.broadcast %1 : vector<1x128xf32> to vector<2x128xf32>
    %20 = arith.addf %18, %19 : vector<2x128xf32>
    %21 = math.tanh %20 : vector<2x128xf32>
    %c0_15 = arith.constant 0 : index
    %c0_16 = arith.constant 0 : index
    %22 = vector.load %arg0[%c0_15, %c0_16] : memref<2x1024xf32, #tpu.memory_space<vmem>>, vector<2x1024xf32>
    %23 = arith.truncf %22 : vector<2x1024xf32> to vector<2x1024xbf16>
    %c0_17 = arith.constant 0 : index
    %c0_18 = arith.constant 0 : index
    %24 = vector.load %arg3[%c0_17, %c0_18] : memref<1024x128xbf16, #tpu.memory_space<vmem>>, vector<1024x128xbf16>
    %cst_19 = arith.constant dense<0.000000e+00> : vector<2x128xf32>
    %25 = tpu.matmul %23, %24, %cst_19 {dimension_numbers = #tpu.dot_dimension_numbers<[1], [0], [0], [1], [0, 0, 1, 1], [], []>} : vector<2x1024xbf16>, vector<1024x128xbf16>, vector<2x128xf32> -> vector<2x128xf32>
    %26 = vector.broadcast %0 : vector<1x128xf32> to vector<2x128xf32>
    %27 = arith.addf %25, %26 : vector<2x128xf32>
    %28 = math.tanh %27 : vector<2x128xf32>
    %29 = arith.truncf %21 : vector<2x128xf32> to vector<2x128xbf16>
    %30 = arith.truncf %28 : vector<2x128xf32> to vector<2x128xbf16>
    %31 = tpu.concatenate %29, %30 in 1 : vector<2x128xbf16>, vector<2x128xbf16> -> vector<2x256xbf16>
    %c0_20 = arith.constant 0 : index
    %c0_21 = arith.constant 0 : index
    %32 = vector.load %arg5[%c0_20, %c0_21] : memref<256x128xbf16, #tpu.memory_space<vmem>>, vector<256x128xbf16>
    %cst_22 = arith.constant dense<0.000000e+00> : vector<2x128xf32>
    %33 = tpu.matmul %31, %32, %cst_22 {dimension_numbers = #tpu.dot_dimension_numbers<[1], [0], [0], [1], [0, 0, 1, 1], [], []>} : vector<2x256xbf16>, vector<256x128xbf16>, vector<2x128xf32> -> vector<2x128xf32>
    %34 = vector.broadcast %2 : vector<1x128xf32> to vector<2x128xf32>
    %35 = arith.addf %33, %34 : vector<2x128xf32>
    %36 = math.tanh %35 : vector<2x128xf32>
    %37 = arith.truncf %36 : vector<2x128xf32> to vector<2x128xbf16>
    %c0_23 = arith.constant 0 : index
    %c0_24 = arith.constant 0 : index
    %38 = vector.load %arg7[%c0_23, %c0_24] : memref<128x16xbf16, #tpu.memory_space<vmem>>, vector<128x16xbf16>
    %cst_25 = arith.constant dense<0.000000e+00> : vector<2x16xf32>
    %39 = tpu.matmul %37, %38, %cst_25 {dimension_numbers = #tpu.dot_dimension_numbers<[1], [0], [0], [1], [0, 0, 1, 1], [], []>} : vector<2x128xbf16>, vector<128x16xbf16>, vector<2x16xf32> -> vector<2x16xf32>
    %cst_26 = arith.constant dense<0xFF800000> : vector<2xf32>
    %40 = vector.multi_reduction <maximumf>, %39, %cst_26 [1] : vector<2x16xf32> to vector<2xf32>
    %41 = vector.shape_cast %40 : vector<2xf32> to vector<2x1xf32>
    %42 = vector.broadcast %41 : vector<2x1xf32> to vector<2x16xf32>
    %43 = arith.subf %39, %42 : vector<2x16xf32>
    %44 = math.exp %43 : vector<2x16xf32>
    %cst_27 = arith.constant dense<0.000000e+00> : vector<2xf32>
    %45 = vector.multi_reduction <add>, %44, %cst_27 [1] : vector<2x16xf32> to vector<2xf32>
    %46 = vector.shape_cast %45 : vector<2xf32> to vector<2x1xf32>
    %47 = tpu.reciprocal %46 : vector<2x1xf32> -> vector<2x1xf32>
    %48 = vector.broadcast %47 : vector<2x1xf32> to vector<2x16xf32>
    %49 = arith.mulf %44, %48 : vector<2x16xf32>
    %c0_28 = arith.constant 0 : index
    %c0_29 = arith.constant 0 : index
    %50 = vector.load %arg6[%c0_28, %c0_29] : memref<16x128xbf16, #tpu.memory_space<vmem>>, vector<16x128xbf16>
    %51 = arith.extf %50 : vector<16x128xbf16> to vector<16x128xf32>
    %cst_30 = arith.constant dense<0.000000e+00> : vector<2x128xf32>
    %52 = tpu.matmul %49, %51, %cst_30 {dimension_numbers = #tpu.dot_dimension_numbers<[1], [0], [0], [1], [0, 0, 1, 1], [], []>} : vector<2x16xf32>, vector<16x128xf32>, vector<2x128xf32> -> vector<2x128xf32>
    %53 = arith.truncf %52 : vector<2x128xf32> to vector<2x128xbf16>
    %54 = tpu.concatenate %29, %30, %53, %37 in 1 : vector<2x128xbf16>, vector<2x128xbf16>, vector<2x128xbf16>, vector<2x128xbf16> -> vector<2x512xbf16>
    %c0_31 = arith.constant 0 : index
    %c0_32 = arith.constant 0 : index
    %55 = vector.load %arg8[%c0_31, %c0_32] : memref<512x128xbf16, #tpu.memory_space<vmem>>, vector<512x128xbf16>
    %cst_33 = arith.constant dense<0.000000e+00> : vector<2x128xf32>
    %56 = tpu.matmul %54, %55, %cst_33 {dimension_numbers = #tpu.dot_dimension_numbers<[1], [0], [0], [1], [0, 0, 1, 1], [], []>} : vector<2x512xbf16>, vector<512x128xbf16>, vector<2x128xf32> -> vector<2x128xf32>
    %57 = vector.broadcast %3 : vector<1x128xf32> to vector<2x128xf32>
    %58 = arith.addf %56, %57 : vector<2x128xf32>
    %59 = math.tanh %58 : vector<2x128xf32>
    %60 = arith.truncf %59 : vector<2x128xf32> to vector<2x128xbf16>
    %c0_34 = arith.constant 0 : index
    %c0_35 = arith.constant 0 : index
    %61 = vector.load %arg9[%c0_34, %c0_35] : memref<128x256xbf16, #tpu.memory_space<vmem>>, vector<128x256xbf16>
    %cst_36 = arith.constant dense<0.000000e+00> : vector<2x256xf32>
    %62 = tpu.matmul %60, %61, %cst_36 {dimension_numbers = #tpu.dot_dimension_numbers<[1], [0], [0], [1], [0, 0, 1, 1], [], []>} : vector<2x128xbf16>, vector<128x256xbf16>, vector<2x256xf32> -> vector<2x256xf32>
    %63 = vector.broadcast %4 : vector<1x256xf32> to vector<2x256xf32>
    %64 = arith.addf %62, %63 : vector<2x256xf32>
    %c0_37 = arith.constant 0 : index
    %c0_38 = arith.constant 0 : index
    %65 = vector.load %arg11[%c0_37, %c0_38] : memref<2x256xf32, #tpu.memory_space<vmem>>, vector<2x256xf32>
    tpu.vector_store %arg11[%c0_37, %c0_38], %64 {strides = array<i32>} : memref<2x256xf32, #tpu.memory_space<vmem>>, vector<2x256xf32>,
    return
  }
}

</mosaic_0001>

<llo_original>
// kernel: vlmrag_forward.1
$region0: #{vlmrag_forward.1}
  #allocation0 [shape = 'u32[]', space=smem, size = 0x4, offset = 0x4, fixed_abs, tag = 'smem constant byte address 0x4 - core index']
  #allocation1 [shape = 'u32[144,128]{1,0:T(1,128)}', space=vmem, size = 0x12000, scoped, tag = 'internal scratch']
  %s0 = inlined_call_operand.vmem [shape: f32[2,1024], index: 0, kind: input, shape index: {}]
  %s1 = inlined_call_operand.vmem [shape: s32[2,8,1], index: 1, kind: input, shape index: {}]
  %s2 = inlined_call_operand.vmem [shape: f32[64,32], index: 2, kind: input, shape index: {}]
  %s3 = inlined_call_operand.hbm [shape: bf16[1024,128], index: 3, kind: input, shape index: {}]
  %s4 = inlined_call_operand.vmem [shape: bf16[32,128], index: 4, kind: input, shape index: {}]
  %s5 = inlined_call_operand.hbm [shape: bf16[256,128], index: 5, kind: input, shape index: {}]
  %s6 = inlined_call_operand.vmem [shape: bf16[16,128], index: 6, kind: input, shape index: {}]
  %s7 = inlined_call_operand.vmem [shape: bf16[128,16], index: 7, kind: input, shape index: {}]
  %s8 = inlined_call_operand.vmem [shape: bf16[512,128], index: 8, kind: input, shape index: {}]
  %s9 = inlined_call_operand.hbm [shape: bf16[128,256], index: 9, kind: input, shape index: {}]
  %s10 = inlined_call_operand.vmem [shape: f32[1,768], index: 10, kind: input, shape index: {}]
  %s11 = inlined_call_operand.hbm [shape: f32[2,256], index: 11, kind: output, shape index: {}]
  %s12 = sld [smem:[#allocation0]]
  $region66: #{vlmrag_forward.1} parent=0
    _
  %s14 = ssub.s32 1, %s12
  %s15 = scalar_select 0, %s14, %s12
  $region1: #{vlmrag_forward.1} parent=0
    #allocation2 [shape = 'u8[262144]{0}', space=vmem, size = 0x40000, scoped, tag = 'input window, operand 3, single buffered']
    #allocation3 [shape = 's32[1]{0}', space=sflag, size = 0x4, scoped, tag = 'scoped memory for vlmrag_forward.1']
    #allocation4 [shape = 's32[1]{0}', space=sflag, size = 0x4, scoped, tag = 'scoped memory for vlmrag_forward.1']
    #allocation5 [shape = 'u8[65536]{0}', space=vmem, size = 0x10000, scoped, tag = 'input window, operand 5, single buffered']
    #allocation6 [shape = 's32[1]{0}', space=sflag, size = 0x4, scoped, tag = 'scoped memory for vlmrag_forward.1']
    #allocation7 [shape = 'u8[65536]{0}', space=vmem, size = 0x10000, scoped, tag = 'input window, operand 9, single buffered']
    #allocation8 [shape = 'u8[2048]{0}', space=vmem, size = 0x800, scoped, tag = 'output window, operand 0, single buffered']
    %16 = vsyncpa [#allocation3], 0
    %17 = vsyncpa [#allocation6], 0
    %18 = vsyncpa [#allocation4], 0
    // Predicated region
    $region2: #{vlmrag_forward.1} parent=1 // pred_check
      _
    $region3: #{vlmrag_forward.1} parent=1 // pred_check_branch
      %20 = sbr.rel (0) target = $region5
    $region4: #{vlmrag_forward.1} parent=1 // pred_region
      _
    $region5: #{vlmrag_forward.1} parent=1 // pred_fallthru
      _
    // Predicated region
    $region6: #{vlmrag_forward.1} parent=1 // pred_check
      _
    $region7: #{vlmrag_forward.1} parent=1 // pred_check_branch
      %22 = sbr.rel (0) target = $region9
    $region8: #{vlmrag_forward.1} parent=1 // pred_region
      _
    $region9: #{vlmrag_forward.1} parent=1 // pred_fallthru
      _
    // Predicated region
    $region10: #{vlmrag_forward.1} parent=1 // pred_check
      _
    $region11: #{vlmrag_forward.1} parent=1 // pred_check_branch
      %24 = sbr.rel (0) target = $region13
    $region12: #{vlmrag_forward.1} parent=1 // pred_region
      _
    $region13: #{vlmrag_forward.1} parent=1 // pred_fallthru
      _
    // Predicated region
    $region14: #{vlmrag_forward.1} parent=1 // pred_check
      _
    $region15: #{vlmrag_forward.1} parent=1 // pred_check_branch
      %26 = sbr.rel (0) target = $region17
    $region16: #{vlmrag_forward.1} parent=1 // pred_region
      %s28 = ssub.s32 8192, 8192
      %29 = vsyncadd [#allocation3], %s28
      %s30 = sshll.u32 [#allocation2], 4
      %s31 = int_to_ptr.vmem [resolvable:$true] %s30
      %36 = dma.hbm_to_vmem [thread:$0]  %s3, 8192, %s31, [#allocation3], 64, 64, 4
    $region17: #{vlmrag_forward.1} parent=1 // pred_fallthru
      _
    // Predicated region
    $region18: #{vlmrag_forward.1} parent=1 // pred_check
      _
    $region19: #{vlmrag_forward.1} parent=1 // pred_check_branch
      %38 = sbr.rel (0) target = $region21
    $region20: #{vlmrag_forward.1} parent=1 // pred_region
      _
    $region21: #{vlmrag_forward.1} parent=1 // pred_fallthru
      _
    // Predicated region
    $region22: #{vlmrag_forward.1} parent=1 // pred_check
      _
    $region23: #{vlmrag_forward.1} parent=1 // pred_check_branch
      %40 = sbr.rel (0) target = $region25
    $region24: #{vlmrag_forward.1} parent=1 // pred_region
      %s42 = ssub.s32 2048, 2048
      %43 = vsyncadd [#allocation6], %s42
      %s44 = sshll.u32 [#allocation5], 4
      %s45 = int_to_ptr.vmem [resolvable:$true] %s44
      %50 = dma.hbm_to_vmem [thread:$0]  %s5, 2048, %s45, [#allocation6], 64, 64, 4
    $region25: #{vlmrag_forward.1} parent=1 // pred_fallthru
      _
    // Predicated region
    $region26: #{vlmrag_forward.1} parent=1 // pred_check
      _
    $region27: #{vlmrag_forward.1} parent=1 // pred_check_branch
      %52 = sbr.rel (0) target = $region29
    $region28: #{vlmrag_forward.1} parent=1 // pred_region
      _
    $region29: #{vlmrag_forward.1} parent=1 // pred_fallthru
      _
    // Predicated region
    $region30: #{vlmrag_forward.1} parent=1 // pred_check
      _
    $region31: #{vlmrag_forward.1} parent=1 // pred_check_branch
      %54 = sbr.rel (0) target = $region33
    $region32: #{vlmrag_forward.1} parent=1 // pred_region
      _
    $region33: #{vlmrag_forward.1} parent=1 // pred_fallthru
      _
    // Predicated region
    $region34: #{vlmrag_forward.1} parent=1 // pred_check
      _
    $region35: #{vlmrag_forward.1} parent=1 // pred_check_branch
      %56 = sbr.rel (0) target = $region37
    $region36: #{vlmrag_forward.1} parent=1 // pred_region
      _
    $region37: #{vlmrag_forward.1} parent=1 // pred_fallthru
      _
    // Predicated region
    $region38: #{vlmrag_forward.1} parent=1 // pred_check
      _
    $region39: #{vlmrag_forward.1} parent=1 // pred_check_branch
      %58 = sbr.rel (0) target = $region41
    $region40: #{vlmrag_forward.1} parent=1 // pred_region
      %s60 = ssub.s32 2048, 2048
      %61 = vsyncadd [#allocation6], %s60
      %s62 = sshll.u32 [#allocation7], 4
      %s63 = int_to_ptr.vmem [resolvable:$true] %s62
      %68 = dma.hbm_to_vmem [thread:$0]  %s9, 2048, %s63, [#allocation6], 128, 128, 8
    $region41: #{vlmrag_forward.1} parent=1 // pred_fallthru
      _
    // Predicated region
    $region42: #{vlmrag_forward.1} parent=1 // pred_check
      _
    $region43: #{vlmrag_forward.1} parent=1 // pred_check_branch
      %70 = sbr.rel (0) target = $region45
    $region44: #{vlmrag_forward.1} parent=1 // pred_region
      _
    $region45: #{vlmrag_forward.1} parent=1 // pred_fallthru
      _
    // Predicated region
    $region46: #{vlmrag_forward.1} parent=1 // pred_check
      _
    $region47: #{vlmrag_forward.1} parent=1 // pred_check_branch
      %72 = sbr.rel (0) target = $region49
    $region48: #{vlmrag_forward.1} parent=1 // pred_region
      %73 = dma.done [#allocation3], 8192
    $region49: #{vlmrag_forward.1} parent=1 // pred_fallthru
      _
    // Predicated region
    $region50: #{vlmrag_forward.1} parent=1 // pred_check
      _
    $region51: #{vlmrag_forward.1} parent=1 // pred_check_branch
      %75 = sbr.rel (0) target = $region53
    $region52: #{vlmrag_forward.1} parent=1 // pred_region
      %76 = dma.done [#allocation6], 2048
    $region53: #{vlmrag_forward.1} parent=1 // pred_fallthru
      _
    // Predicated region
    $region54: #{vlmrag_forward.1} parent=1 // pred_check
      _
    $region55: #{vlmrag_forward.1} parent=1 // pred_check_branch
      %78 = sbr.rel (0) target = $region57
    $region56: #{vlmrag_forward.1} parent=1 // pred_region
      %79 = dma.done [#allocation6], 2048
    $region57: #{vlmrag_forward.1} parent=1 // pred_fallthru
      _
    %v81 = vld [vmem:[%s10] sm:$0x1]
    %v82 = vld [vmem:[%s10 + $0x1] sm:$0x1]
    %v83 = vld [vmem:[%s10 + $0x2] sm:$0x1]
    %v84 = vld [vmem:[%s10 + $0x3] sm:$0x1]
    %v85 = vld [vmem:[%s10 + $0x4] sm:$0x3]
    %v86 = vld [vmem:[%s1] sm:$0xff]
    %v87 = vld [vmem:[%s1 + $0x8] sm:$0xff]
    %v88 = vlaneseq
    %v89 = vand.u32 %v88, 127
    %90 = vset.pattern.permute.xlu0 0
    %91 = vperm.xlu0 %90, %v86
    %v92 = vpop.permute.xlu0 %91
    %93 = vset.pattern.permute.xlu0 0
    %94 = vperm.xlu0 %93, %v87
    %v95 = vpop.permute.xlu0 %94
    %vm96 = vcmp.eq.s32.totalorder %v92, %v89
    %vm97 = vcmp.eq.s32.totalorder %v95, %v89
    %v98 = vsel %vm96, 1, 0
    %v99 = vsel %vm97, 1, 0
    %v100 = vcvt.s32.f32 %v98
    %v101 = vcvt.s32.f32 %v99
    %vm102 = vcmask 523264
    %v103 = vsel %vm102, %v100, 0.0
    %v104 = vrot.slane %v103, 4
    %v105 = vadd.f32 %v103, %v104
    %v106 = vrot.slane %v105, 2
    %v107 = vadd.f32 %v105, %v106
    %v108 = vrot.slane %v107, 1
    %v109 = vadd.f32 %v107, %v108
    %v110 = vsel %vm102, %v101, 0.0
    %v111 = vrot.slane %v110, 4
    %v112 = vadd.f32 %v110, %v111
    %v113 = vrot.slane %v112, 2
    %v114 = vadd.f32 %v112, %v113
    %v115 = vrot.slane %v114, 1
    %v116 = vadd.f32 %v114, %v115
    %v117 = vmul.f32 %v109, 0.125
    %v118 = vmul.f32 %v116, 0.125
    %v119 = vld [vmem:[%s2] sm:$0xff]
    %v120 = vld [vmem:[%s2 + $0x8] sm:$0xff]
    %v121 = vld [vmem:[%s2 + $0x10] sm:$0xff]
    %v122 = vld [vmem:[%s2 + $0x18] sm:$0xff]
    %v123 = vld [vmem:[%s2 + $0x20] sm:$0xff]
    %v124 = vld [vmem:[%s2 + $0x28] sm:$0xff]
    %v125 = vld [vmem:[%s2 + $0x30] sm:$0xff]
    %v126 = vld [vmem:[%s2 + $0x38] sm:$0xff]
    %vm129 = vcmask 1041409
    %v130 = vsel %vm129, %v118, %v117
    %v131 = vsel %vm102, %v130, 0
    %133 = vmatprep.subr.mxu0 0.0
    %134 = vmatpush1.msra.mxu0 %v119
    %135 = vmatprep.subr.mxu0 0.0
    %136 = vmatpush1.msra.mxu0 %v120
    %137 = vmatprep.subr.mxu0 0.0
    %138 = vmatpush1.msra.mxu0 %v121
    %139 = vmatprep.subr.mxu0 0.0
    %140 = vmatpush1.msra.mxu0 %v122
    %141 = vmatprep.subr.mxu0 0.0
    %142 = vmatpush1.msra.mxu0 %v123
    %143 = vmatprep.subr.mxu0 0.0
    %144 = vmatpush1.msra.mxu0 %v124
    %145 = vmatprep.subr.mxu0 0.0
    %146 = vmatpush1.msra.mxu0 %v125
    %147 = vmatprep.subr.mxu0 0.0
    %148 = vmatpush1.msra.mxu0 %v126
    %149 = vmatprep.subr.mxu0 0.0
    %150 = vmatpush1.msra.mxu0 0.0
    %151 = vmatprep.subr.mxu0 0.0
    %152 = vmatpush1.msra.mxu0 0.0
    %153 = vmatprep.subr.mxu0 0.0
    %154 = vmatpush1.msra.mxu0 0.0
    %155 = vmatprep.subr.mxu0 0.0
    %156 = vmatpush1.msra.mxu0 0.0
    %157 = vmatprep.subr.mxu0 0.0
    %158 = vmatpush1.msra.mxu0 0.0
    %159 = vmatprep.subr.mxu0 0.0
    %160 = vmatpush1.msra.mxu0 0.0
    %161 = vmatprep.subr.mxu0 0.0
    %162 = vmatpush1.msra.mxu0 0.0
    %163 = vmatprep.subr.mxu0 0.0
    %164 = vmatpush1.msra.mxu0 0.0
    %165 = vmatprep.subr.mxu0 0.0
    %166 = vmatpush1.msra.mxu0 0.0
    %167 = vmatprep.subr.mxu0 0.0
    %168 = vmatpush1.msra.mxu0 0.0
    %169 = vmatprep.subr.mxu0 0.0
    %170 = vmatpush1.msra.mxu0 0.0
    %171 = vmatprep.subr.mxu0 0.0
    %172 = vmatpush1.msra.mxu0 0.0
    %173 = vmatprep.subr.mxu0 0.0
    %174 = vmatpush1.msra.mxu0 0.0
    %175 = vmatprep.subr.mxu0 0.0
    %176 = vmatpush1.msra.mxu0 0.0
    %177 = vmatprep.subr.mxu0 0.0
    %178 = vmatpush1.msra.mxu0 0.0
    %179 = vmatprep.subr.mxu0 0.0
    %180 = vmatpush1.msra.mxu0 0.0
    %181 = vmatprep.subr.mxu0 0.0
    %182 = vmatpush1.msra.mxu0 0.0
    %183 = vmatprep.subr.mxu0 0.0
    %184 = vmatpush1.msra.mxu0 0.0
    %185 = vmatprep.subr.mxu0 0.0
    %186 = vmatpush1.msra.mxu0 0.0
    %187 = vmatprep.subr.mxu0 0.0
    %188 = vmatpush1.msra.mxu0 0.0
    %189 = vmatprep.subr.mxu0 0.0
    %190 = vmatpush1.msra.mxu0 0.0
    %191 = vmatprep.subr.mxu0 0.0
    %192 = vmatpush1.msra.mxu0 0.0
    %193 = vmatprep.subr.mxu0 0.0
    %194 = vmatpush1.msra.mxu0 0.0
    %195 = vmatprep.subr.mxu0 0.0
    %196 = vmatpush1.msra.mxu0 0.0
    %197 = vmatprep.mubr.f32.mxu0 0.0
    %198 = vmatmul.mubr.f32.gmra.mrb[0].mxu0 %v131
    %v199 = vpop.f32.mrb[0].mxu0
    %v200 = vadd.f32 0.0, %v199
    %v201 = vpop.f32.mrb[0].mxu0
    %202 = vdwg.mxu0
    %v203 = vpack.c.bf16 %v200, %v200
    %v204 = vld [vmem:[%s4] sm:$0xf]
    %v205 = vld [vmem:[%s4 + $0x4] sm:$0xf]
    %v206 = vld [vmem:[%s4 + $0x8] sm:$0xf]
    %v207 = vld [vmem:[%s4 + $0xc] sm:$0xf]
    %v209 = vlaneseq
    %v210 = vshrl.u32 %v209, 7
    %v211 = vsub.s32 0, %v210
    %v212 = vrot.slane %v82, %v211
    %v218 = vunpack.c.l.b16 %v204
    %v219 = vunpack.c.l.b16 %v205
    %v220 = vunpack.c.l.b16 %v206
    %v221 = vunpack.c.l.b16 %v207
    %v222 = vpack.c.b16 %v219, %v218
    %v223 = vpack.c.b16 %v221, %v220
    %vm226 = vcmask 261120
    %v228 = vsel %vm226, %v203, 0
    %230 = vmatprep.subr.bf16.mxu0 0
    %231 = vmatpush1.bf16.msra.mxu0 %v222
    %232 = vmatprep.subr.bf16.mxu0 0
    %233 = vmatpush1.bf16.msra.mxu0 %v223
    %234 = vmatprep.subr.bf16.mxu0 0
    %235 = vmatpush1.bf16.msra.mxu0 0
    %236 = vmatprep.subr.bf16.mxu0 0
    %237 = vmatpush1.bf16.msra.mxu0 0
    %238 = vmatprep.subr.bf16.mxu0 0
    %239 = vmatpush1.bf16.msra.mxu0 0
    %240 = vmatprep.subr.bf16.mxu0 0
    %241 = vmatpush1.bf16.msra.mxu0 0
    %242 = vmatprep.subr.bf16.mxu0 0
    %243 = vmatpush1.bf16.msra.mxu0 0
    %244 = vmatprep.subr.bf16.mxu0 0
    %245 = vmatpush1.bf16.msra.mxu0 0
    %246 = vmatprep.subr.bf16.mxu0 0
    %247 = vmatpush1.bf16.msra.mxu0 0
    %248 = vmatprep.subr.bf16.mxu0 0
    %249 = vmatpush1.bf16.msra.mxu0 0
    %250 = vmatprep.subr.bf16.mxu0 0
    %251 = vmatpush1.bf16.msra.mxu0 0
    %252 = vmatprep.subr.bf16.mxu0 0
    %253 = vmatpush1.bf16.msra.mxu0 0
    %254 = vmatprep.subr.bf16.mxu0 0
    %255 = vmatpush1.bf16.msra.mxu0 0
    %256 = vmatprep.subr.bf16.mxu0 0
    %257 = vmatpush1.bf16.msra.mxu0 0
    %258 = vmatprep.subr.bf16.mxu0 0
    %259 = vmatpush1.bf16.msra.mxu0 0
    %260 = vmatprep.subr.bf16.mxu0 0
    %261 = vmatpush1.bf16.msra.mxu0 0
    %262 = vmatprep.mubr.bf16.mxu0 0
    %263 = vmatmul.mubr.bf16.gmra.mrb[0].mxu0 %v228
    %v264 = vpop.f32.mrb[0].mxu0
    %v265 = vadd.f32 %v212, %v264
    %v266 = vpop.f32.mrb[0].mxu0
    %v267 = vpop.f32.mrb[0].mxu0
    %v268 = vpop.f32.mrb[0].mxu0
    %269 = vdwg.mxu0
    %v270 = vtanh.pop %v265
    %v271 = vld [vmem:[%s0] sm:$0xff]
    %v272 = vld [vmem:[%s0 + $0x8] sm:$0xff]
    %v275 = vcombine.high %v271, %v271
    %v277 = vunpack.c.l.s4 1983009808
    %v278 = vunpack.c.0.s8 %v277
    %v279 = vlaneseq
    %v280 = vshrl.u32 %v279, 7
    %v281 = vsub.s32 %v278, %v280
    %v282 = vrot.slane %v271, %v281
    %v284 = vunpack.c.l.s4 1983009808
    %v285 = vunpack.c.0.s8 %v284
    %v286 = vlaneseq
    %v287 = vshrl.u32 %v286, 7
    %v288 = vsub.s32 %v285, %v287
    %v289 = vrot.slane %v275, %v288
    %v290 = vcombine.high %v282, %v282
    %v291 = vcombine.high %v289, %v289
    %v292 = vcombine.high %v272, %v272
    %v294 = vunpack.c.l.s4 1983009808
    %v295 = vunpack.c.0.s8 %v294
    %v296 = vlaneseq
    %v297 = vshrl.u32 %v296, 7
    %v298 = vsub.s32 %v295, %v297
    %v299 = vrot.slane %v272, %v298
    %v301 = vunpack.c.l.s4 1983009808
    %v302 = vunpack.c.0.s8 %v301
    %v303 = vlaneseq
    %v304 = vshrl.u32 %v303, 7
    %v305 = vsub.s32 %v302, %v304
    %v306 = vrot.slane %v292, %v305
    %v307 = vcombine.high %v299, %v299
    %v308 = vcombine.high %v306, %v306
    %v317 = vpack.c.bf16 %v282, %v282
    %v318 = vpack.c.bf16 %v290, %v290
    %v319 = vpack.c.bf16 %v289, %v289
    %v320 = vpack.c.bf16 %v291, %v291
    %v321 = vpack.c.bf16 %v299, %v299
    %v322 = vpack.c.bf16 %v307, %v307
    %v323 = vpack.c.bf16 %v306, %v306
    %v324 = vpack.c.bf16 %v308, %v308
    %v325 = vld [vmem:[#allocation2] sm:$0xf]
    %v326 = vld [vmem:[#allocation2 + $0x4] sm:$0xf]
    %v327 = vld [vmem:[#allocation2 + $0x8] sm:$0xf]
    %v328 = vld [vmem:[#allocation2 + $0xc] sm:$0xf]
    %v329 = vld [vmem:[#allocation2 + $0x10] sm:$0xf]
    %v330 = vld [vmem:[#allocation2 + $0x14] sm:$0xf]
    %v331 = vld [vmem:[#allocation2 + $0x18] sm:$0xf]
    %v332 = vld [vmem:[#allocation2 + $0x1c] sm:$0xf]
    %v333 = vld [vmem:[#allocation2 + $0x20] sm:$0xf]
    %v334 = vld [vmem:[#allocation2 + $0x24] sm:$0xf]
    %v335 = vld [vmem:[#allocation2 + $0x28] sm:$0xf]
    %v336 = vld [vmem:[#allocation2 + $0x2c] sm:$0xf]
    %v337 = vld [vmem:[#allocation2 + $0x30] sm:$0xf]
    %v338 = vld [vmem:[#allocation2 + $0x34] sm:$0xf]
    %v339 = vld [vmem:[#allocation2 + $0x38] sm:$0xf]
    %v340 = vld [vmem:[#allocation2 + $0x3c] sm:$0xf]
    %v341 = vld [vmem:[#allocation2 + $0x40] sm:$0xf]
    %v342 = vld [vmem:[#allocation2 + $0x44] sm:$0xf]
    %v343 = vld [vmem:[#allocation2 + $0x48] sm:$0xf]
    %v344 = vld [vmem:[#allocation2 + $0x4c] sm:$0xf]
    %v345 = vld [vmem:[#allocation2 + $0x50] sm:$0xf]
    %v346 = vld [vmem:[#allocation2 + $0x54] sm:$0xf]
    %v347 = vld [vmem:[#allocation2 + $0x58] sm:$0xf]
    %v348 = vld [vmem:[#allocation2 + $0x5c] sm:$0xf]
    %v349 = vld [vmem:[#allocation2 + $0x60] sm:$0xf]
    %v350 = vld [vmem:[#allocation2 + $0x64] sm:$0xf]
    %v351 = vld [vmem:[#allocation2 + $0x68] sm:$0xf]
    %v352 = vld [vmem:[#allocation2 + $0x6c] sm:$0xf]
    %v353 = vld [vmem:[#allocation2 + $0x70] sm:$0xf]
    %v354 = vld [vmem:[#allocation2 + $0x74] sm:$0xf]
    %v355 = vld [vmem:[#allocation2 + $0x78] sm:$0xf]
    %v356 = vld [vmem:[#allocation2 + $0x7c] sm:$0xf]
    %v357 = vld [vmem:[#allocation2 + $0x80] sm:$0xf]
    %v358 = vld [vmem:[#allocation2 + $0x84] sm:$0xf]
    %v359 = vld [vmem:[#allocation2 + $0x88] sm:$0xf]
    %v360 = vld [vmem:[#allocation2 + $0x8c] sm:$0xf]
    %v361 = vld [vmem:[#allocation2 + $0x90] sm:$0xf]
    %v362 = vld [vmem:[#allocation2 + $0x94] sm:$0xf]
    %v363 = vld [vmem:[#allocation2 + $0x98] sm:$0xf]
    %v364 = vld [vmem:[#allocation2 + $0x9c] sm:$0xf]
    %v365 = vld [vmem:[#allocation2 + $0xa0] sm:$0xf]
    %v366 = vld [vmem:[#allocation2 + $0xa4] sm:$0xf]
    %v367 = vld [vmem:[#allocation2 + $0xa8] sm:$0xf]
    %v368 = vld [vmem:[#allocation2 + $0xac] sm:$0xf]
    %v369 = vld [vmem:[#allocation2 + $0xb0] sm:$0xf]
    %v370 = vld [vmem:[#allocation2 + $0xb4] sm:$0xf]
    %v371 = vld [vmem:[#allocation2 + $0xb8] sm:$0xf]
    %v372 = vld [vmem:[#allocation2 + $0xbc] sm:$0xf]
    %v373 = vld [vmem:[#allocation2 + $0xc0] sm:$0xf]
    %v374 = vld [vmem:[#allocation2 + $0xc4] sm:$0xf]
    %v375 = vld [vmem:[#allocation2 + $0xc8] sm:$0xf]
    %v376 = vld [vmem:[#allocation2 + $0xcc] sm:$0xf]
    %v377 = vld [vmem:[#allocation2 + $0xd0] sm:$0xf]
    %v378 = vld [vmem:[#allocation2 + $0xd4] sm:$0xf]
    %v379 = vld [vmem:[#allocation2 + $0xd8] sm:$0xf]
    %v380 = vld [vmem:[#allocation2 + $0xdc] sm:$0xf]
    %v381 = vld [vmem:[#allocation2 + $0xe0] sm:$0xf]
    %v382 = vld [vmem:[#allocation2 + $0xe4] sm:$0xf]
    %v383 = vld [vmem:[#allocation2 + $0xe8] sm:$0xf]
    %v384 = vld [vmem:[#allocation2 + $0xec] sm:$0xf]
    %v385 = vld [vmem:[#allocation2 + $0xf0] sm:$0xf]
    %v386 = vld [vmem:[#allocation2 + $0xf4] sm:$0xf]
    %v387 = vld [vmem:[#allocation2 + $0xf8] sm:$0xf]
    %v388 = vld [vmem:[#allocation2 + $0xfc] sm:$0xf]
    %v389 = vld [vmem:[#allocation2 + $0x100] sm:$0xf]
    %v390 = vld [vmem:[#allocation2 + $0x104] sm:$0xf]
    %v391 = vld [vmem:[#allocation2 + $0x108] sm:$0xf]
    %v392 = vld [vmem:[#allocation2 + $0x10c] sm:$0xf]
    %v393 = vld [vmem:[#allocation2 + $0x110] sm:$0xf]
    %v394 = vld [vmem:[#allocation2 + $0x114] sm:$0xf]
    %v395 = vld [vmem:[#allocation2 + $0x118] sm:$0xf]
    %v396 = vld [vmem:[#allocation2 + $0x11c] sm:$0xf]
    %v397 = vld [vmem:[#allocation2 + $0x120] sm:$0xf]
    %v398 = vld [vmem:[#allocation2 + $0x124] sm:$0xf]
    %v399 = vld [vmem:[#allocation2 + $0x128] sm:$0xf]
    %v400 = vld [vmem:[#allocation2 + $0x12c] sm:$0xf]
    %v401 = vld [vmem:[#allocation2 + $0x130] sm:$0xf]
    %v402 = vld [vmem:[#allocation2 + $0x134] sm:$0xf]
    %v403 = vld [vmem:[#allocation2 + $0x138] sm:$0xf]
    %v404 = vld [vmem:[#allocation2 + $0x13c] sm:$0xf]
    %v405 = vld [vmem:[#allocation2 + $0x140] sm:$0xf]
    %v406 = vld [vmem:[#allocation2 + $0x144] sm:$0xf]
    %v407 = vld [vmem:[#allocation2 + $0x148] sm:$0xf]
    %v408 = vld [vmem:[#allocation2 + $0x14c] sm:$0xf]
    %v409 = vld [vmem:[#allocation2 + $0x150] sm:$0xf]
    %v410 = vld [vmem:[#allocation2 + $0x154] sm:$0xf]
    %v411 = vld [vmem:[#allocation2 + $0x158] sm:$0xf]
    %v412 = vld [vmem:[#allocation2 + $0x15c] sm:$0xf]
    %v413 = vld [vmem:[#allocation2 + $0x160] sm:$0xf]
    %v414 = vld [vmem:[#allocation2 + $0x164] sm:$0xf]
    %v415 = vld [vmem:[#allocation2 + $0x168] sm:$0xf]
    %v416 = vld [vmem:[#allocation2 + $0x16c] sm:$0xf]
    %v417 = vld [vmem:[#allocation2 + $0x170] sm:$0xf]
    %v418 = vld [vmem:[#allocation2 + $0x174] sm:$0xf]
    %v419 = vld [vmem:[#allocation2 + $0x178] sm:$0xf]
    %v420 = vld [vmem:[#allocation2 + $0x17c] sm:$0xf]
    %v421 = vld [vmem:[#allocation2 + $0x180] sm:$0xf]
    %v422 = vld [vmem:[#allocation2 + $0x184] sm:$0xf]
    %v423 = vld [vmem:[#allocation2 + $0x188] sm:$0xf]
    %v424 = vld [vmem:[#allocation2 + $0x18c] sm:$0xf]
    %v425 = vld [vmem:[#allocation2 + $0x190] sm:$0xf]
    %v426 = vld [vmem:[#allocation2 + $0x194] sm:$0xf]
    %v427 = vld [vmem:[#allocation2 + $0x198] sm:$0xf]
    %v428 = vld [vmem:[#allocation2 + $0x19c] sm:$0xf]
    %v429 = vld [vmem:[#allocation2 + $0x1a0] sm:$0xf]
    %v430 = vld [vmem:[#allocation2 + $0x1a4] sm:$0xf]
    %v431 = vld [vmem:[#allocation2 + $0x1a8] sm:$0xf]
    %v432 = vld [vmem:[#allocation2 + $0x1ac] sm:$0xf]
    %v433 = vld [vmem:[#allocation2 + $0x1b0] sm:$0xf]
    %v434 = vld [vmem:[#allocation2 + $0x1b4] sm:$0xf]
    %v435 = vld [vmem:[#allocation2 + $0x1b8] sm:$0xf]
    %v436 = vld [vmem:[#allocation2 + $0x1bc] sm:$0xf]
    %v437 = vld [vmem:[#allocation2 + $0x1c0] sm:$0xf]
    %v438 = vld [vmem:[#allocation2 + $0x1c4] sm:$0xf]
    %v439 = vld [vmem:[#allocation2 + $0x1c8] sm:$0xf]
    %v440 = vld [vmem:[#allocation2 + $0x1cc] sm:$0xf]
    %v441 = vld [vmem:[#allocation2 + $0x1d0] sm:$0xf]
    %v442 = vld [vmem:[#allocation2 + $0x1d4] sm:$0xf]
    %v443 = vld [vmem:[#allocation2 + $0x1d8] sm:$0xf]
    %v444 = vld [vmem:[#allocation2 + $0x1dc] sm:$0xf]
    %v445 = vld [vmem:[#allocation2 + $0x1e0] sm:$0xf]
    %v446 = vld [vmem:[#allocation2 + $0x1e4] sm:$0xf]
    %v447 = vld [vmem:[#allocation2 + $0x1e8] sm:$0xf]
    %v448 = vld [vmem:[#allocation2 + $0x1ec] sm:$0xf]
    %v449 = vld [vmem:[#allocation2 + $0x1f0] sm:$0xf]
    %v450 = vld [vmem:[#allocation2 + $0x1f4] sm:$0xf]
    %v451 = vld [vmem:[#allocation2 + $0x1f8] sm:$0xf]
    %v452 = vld [vmem:[#allocation2 + $0x1fc] sm:$0xf]
    %v454 = vlaneseq
    %v455 = vshrl.u32 %v454, 7
    %v456 = vsub.s32 0, %v455
    %v457 = vrot.slane %v81, %v456
    %v587 = vunpack.c.l.b16 %v325
    %v588 = vunpack.c.l.b16 %v326
    %v589 = vunpack.c.l.b16 %v327
    %v590 = vunpack.c.l.b16 %v328
    %v591 = vunpack.c.l.b16 %v329
    %v592 = vunpack.c.l.b16 %v330
    %v593 = vunpack.c.l.b16 %v331
    %v594 = vunpack.c.l.b16 %v332
    %v595 = vunpack.c.l.b16 %v333
    %v596 = vunpack.c.l.b16 %v334
    %v597 = vunpack.c.l.b16 %v335
    %v598 = vunpack.c.l.b16 %v336
    %v599 = vunpack.c.l.b16 %v337
    %v600 = vunpack.c.l.b16 %v338
    %v601 = vunpack.c.l.b16 %v339
    %v602 = vunpack.c.l.b16 %v340
    %v603 = vunpack.c.l.b16 %v341
    %v604 = vunpack.c.l.b16 %v342
    %v605 = vunpack.c.l.b16 %v343
    %v606 = vunpack.c.l.b16 %v344
    %v607 = vunpack.c.l.b16 %v345
    %v608 = vunpack.c.l.b16 %v346
    %v609 = vunpack.c.l.b16 %v347
    %v610 = vunpack.c.l.b16 %v348
    %v611 = vunpack.c.l.b16 %v349
    %v612 = vunpack.c.l.b16 %v350
    %v613 = vunpack.c.l.b16 %v351
    %v614 = vunpack.c.l.b16 %v352
    %v615 = vunpack.c.l.b16 %v353
    %v616 = vunpack.c.l.b16 %v354
    %v617 = vunpack.c.l.b16 %v355
    %v618 = vunpack.c.l.b16 %v356
    %v619 = vunpack.c.l.b16 %v357
    %v620 = vunpack.c.l.b16 %v358
    %v621 = vunpack.c.l.b16 %v359
    %v622 = vunpack.c.l.b16 %v360
    %v623 = vunpack.c.l.b16 %v361
    %v624 = vunpack.c.l.b16 %v362
    %v625 = vunpack.c.l.b16 %v363
    %v626 = vunpack.c.l.b16 %v364
    %v627 = vunpack.c.l.b16 %v365
    %v628 = vunpack.c.l.b16 %v366
    %v629 = vunpack.c.l.b16 %v367
    %v630 = vunpack.c.l.b16 %v368
    %v631 = vunpack.c.l.b16 %v369
    %v632 = vunpack.c.l.b16 %v370
    %v633 = vunpack.c.l.b16 %v371
    %v634 = vunpack.c.l.b16 %v372
    %v635 = vunpack.c.l.b16 %v373
    %v636 = vunpack.c.l.b16 %v374
    %v637 = vunpack.c.l.b16 %v375
    %v638 = vunpack.c.l.b16 %v376
    %v639 = vunpack.c.l.b16 %v377
    %v640 = vunpack.c.l.b16 %v378
    %v641 = vunpack.c.l.b16 %v379
    %v642 = vunpack.c.l.b16 %v380
    %v643 = vunpack.c.l.b16 %v381
    %v644 = vunpack.c.l.b16 %v382
    %v645 = vunpack.c.l.b16 %v383
    %v646 = vunpack.c.l.b16 %v384
    %v647 = vunpack.c.l.b16 %v385
    %v648 = vunpack.c.l.b16 %v386
    %v649 = vunpack.c.l.b16 %v387
    %v650 = vunpack.c.l.b16 %v388
    %v651 = vunpack.c.l.b16 %v389
    %v652 = vunpack.c.l.b16 %v390
    %v653 = vunpack.c.l.b16 %v391
    %v654 = vunpack.c.l.b16 %v392
    %v655 = vunpack.c.l.b16 %v393
    %v656 = vunpack.c.l.b16 %v394
    %v657 = vunpack.c.l.b16 %v395
    %v658 = vunpack.c.l.b16 %v396
    %v659 = vunpack.c.l.b16 %v397
    %v660 = vunpack.c.l.b16 %v398
    %v661 = vunpack.c.l.b16 %v399
    %v662 = vunpack.c.l.b16 %v400
    %v663 = vunpack.c.l.b16 %v401
    %v664 = vunpack.c.l.b16 %v402
    %v665 = vunpack.c.l.b16 %v403
    %v666 = vunpack.c.l.b16 %v404
    %v667 = vunpack.c.l.b16 %v405
    %v668 = vunpack.c.l.b16 %v406
    %v669 = vunpack.c.l.b16 %v407
    %v670 = vunpack.c.l.b16 %v408
    %v671 = vunpack.c.l.b16 %v409
    %v672 = vunpack.c.l.b16 %v410
    %v673 = vunpack.c.l.b16 %v411
    %v674 = vunpack.c.l.b16 %v412
    %v675 = vunpack.c.l.b16 %v413
    %v676 = vunpack.c.l.b16 %v414
    %v677 = vunpack.c.l.b16 %v415
    %v678 = vunpack.c.l.b16 %v416
    %v679 = vunpack.c.l.b16 %v417
    %v680 = vunpack.c.l.b16 %v418
    %v681 = vunpack.c.l.b16 %v419
    %v682 = vunpack.c.l.b16 %v420
    %v683 = vunpack.c.l.b16 %v421
    %v684 = vunpack.c.l.b16 %v422
    %v685 = vunpack.c.l.b16 %v423
    %v686 = vunpack.c.l.b16 %v424
    %v687 = vunpack.c.l.b16 %v425
    %v688 = vunpack.c.l.b16 %v426
    %v689 = vunpack.c.l.b16 %v427
    %v690 = vunpack.c.l.b16 %v428
    %v691 = vunpack.c.l.b16 %v429
    %v692 = vunpack.c.l.b16 %v430
    %v693 = vunpack.c.l.b16 %v431
    %v694 = vunpack.c.l.b16 %v432
    %v695 = vunpack.c.l.b16 %v433
    %v696 = vunpack.c.l.b16 %v434
    %v697 = vunpack.c.l.b16 %v435
    %v698 = vunpack.c.l.b16 %v436
    %v699 = vunpack.c.l.b16 %v437
    %v700 = vunpack.c.l.b16 %v438
    %v701 = vunpack.c.l.b16 %v439
    %v702 = vunpack.c.l.b16 %v440
    %v703 = vunpack.c.l.b16 %v441
    %v704 = vunpack.c.l.b16 %v442
    %v705 = vunpack.c.l.b16 %v443
    %v706 = vunpack.c.l.b16 %v444
    %v707 = vunpack.c.l.b16 %v445
    %v708 = vunpack.c.l.b16 %v446
    %v709 = vunpack.c.l.b16 %v447
    %v710 = vunpack.c.l.b16 %v448
    %v711 = vunpack.c.l.b16 %v449
    %v712 = vunpack.c.l.b16 %v450
    %v713 = vunpack.c.l.b16 %v451
    %v714 = vunpack.c.l.b16 %v452
    %v715 = vpack.c.b16 %v588, %v587
    %v716 = vpack.c.b16 %v590, %v589
    %v717 = vpack.c.b16 %v592, %v591
    %v718 = vpack.c.b16 %v594, %v593
    %v719 = vpack.c.b16 %v596, %v595
    %v720 = vpack.c.b16 %v598, %v597
    %v721 = vpack.c.b16 %v600, %v599
    %v722 = vpack.c.b16 %v602, %v601
    %v723 = vpack.c.b16 %v604, %v603
    %v724 = vpack.c.b16 %v606, %v605
    %v725 = vpack.c.b16 %v608, %v607
    %v726 = vpack.c.b16 %v610, %v609
    %v727 = vpack.c.b16 %v612, %v611
    %v728 = vpack.c.b16 %v614, %v613
    %v729 = vpack.c.b16 %v616, %v615
    %v730 = vpack.c.b16 %v618, %v617
    %v731 = vpack.c.b16 %v620, %v619
    %v732 = vpack.c.b16 %v622, %v621
    %v733 = vpack.c.b16 %v624, %v623
    %v734 = vpack.c.b16 %v626, %v625
    %v735 = vpack.c.b16 %v628, %v627
    %v736 = vpack.c.b16 %v630, %v629
    %v737 = vpack.c.b16 %v632, %v631
    %v738 = vpack.c.b16 %v634, %v633
    %v739 = vpack.c.b16 %v636, %v635
    %v740 = vpack.c.b16 %v638, %v637
    %v741 = vpack.c.b16 %v640, %v639
    %v742 = vpack.c.b16 %v642, %v641
    %v743 = vpack.c.b16 %v644, %v643
    %v744 = vpack.c.b16 %v646, %v645
    %v745 = vpack.c.b16 %v648, %v647
    %v746 = vpack.c.b16 %v650, %v649
    %v747 = vpack.c.b16 %v652, %v651
    %v748 = vpack.c.b16 %v654, %v653
    %v749 = vpack.c.b16 %v656, %v655
    %v750 = vpack.c.b16 %v658, %v657
    %v751 = vpack.c.b16 %v660, %v659
    %v752 = vpack.c.b16 %v662, %v661
    %v753 = vpack.c.b16 %v664, %v663
    %v754 = vpack.c.b16 %v666, %v665
    %v755 = vpack.c.b16 %v668, %v667
    %v756 = vpack.c.b16 %v670, %v669
    %v757 = vpack.c.b16 %v672, %v671
    %v758 = vpack.c.b16 %v674, %v673
    %v759 = vpack.c.b16 %v676, %v675
    %v760 = vpack.c.b16 %v678, %v677
    %v761 = vpack.c.b16 %v680, %v679
    %v762 = vpack.c.b16 %v682, %v681
    %v763 = vpack.c.b16 %v684, %v683
    %v764 = vpack.c.b16 %v686, %v685
    %v765 = vpack.c.b16 %v688, %v687
    %v766 = vpack.c.b16 %v690, %v689
    %v767 = vpack.c.b16 %v692, %v691
    %v768 = vpack.c.b16 %v694, %v693
    %v769 = vpack.c.b16 %v696, %v695
    %v770 = vpack.c.b16 %v698, %v697
    %v771 = vpack.c.b16 %v700, %v699
    %v772 = vpack.c.b16 %v702, %v701
    %v773 = vpack.c.b16 %v704, %v703
    %v774 = vpack.c.b16 %v706, %v705
    %v775 = vpack.c.b16 %v708, %v707
    %v776 = vpack.c.b16 %v710, %v709
    %v777 = vpack.c.b16 %v712, %v711
    %v778 = vpack.c.b16 %v714, %v713
    %843 = vmatprep.subr.bf16.mxu0 0
    %844 = vmatpush1.bf16.msra.mxu0 %v715
    %845 = vmatprep.subr.bf16.mxu0 0
    %846 = vmatpush1.bf16.msra.mxu0 %v716
    %847 = vmatprep.subr.bf16.mxu0 0
    %848 = vmatpush1.bf16.msra.mxu0 %v717
    %849 = vmatprep.subr.bf16.mxu0 0
    %850 = vmatpush1.bf16.msra.mxu0 %v718
    %851 = vmatprep.subr.bf16.mxu0 0
    %852 = vmatpush1.bf16.msra.mxu0 %v719
    %853 = vmatprep.subr.bf16.mxu0 0
    %854 = vmatpush1.bf16.msra.mxu0 %v720
    %855 = vmatprep.subr.bf16.mxu0 0
    %856 = vmatpush1.bf16.msra.mxu0 %v721
    %857 = vmatprep.subr.bf16.mxu0 0
    %858 = vmatpush1.bf16.msra.mxu0 %v722
    %859 = vmatprep.subr.bf16.mxu0 0
    %860 = vmatpush1.bf16.msra.mxu0 %v723
    %861 = vmatprep.subr.bf16.mxu0 0
    %862 = vmatpush1.bf16.msra.mxu0 %v724
    %863 = vmatprep.subr.bf16.mxu0 0
    %864 = vmatpush1.bf16.msra.mxu0 %v725
    %865 = vmatprep.subr.bf16.mxu0 0
    %866 = vmatpush1.bf16.msra.mxu0 %v726
    %867 = vmatprep.subr.bf16.mxu0 0
    %868 = vmatpush1.bf16.msra.mxu0 %v727
    %869 = vmatprep.subr.bf16.mxu0 0
    %870 = vmatpush1.bf16.msra.mxu0 %v728
    %871 = vmatprep.subr.bf16.mxu0 0
    %872 = vmatpush1.bf16.msra.mxu0 %v729
    %873 = vmatprep.subr.bf16.mxu0 0
    %874 = vmatpush1.bf16.msra.mxu0 %v730
    %875 = vmatprep.mubr.bf16.mxu0 %v318
    %876 = vmatmul.mubr.bf16.gmra.mrb[0].mxu0 %v317
    %v877 = vpop.f32.mrb[0].mxu0
    %v878 = vadd.f32 %v457, %v877
    %v879 = vpop.f32.mrb[0].mxu0
    %v880 = vpop.f32.mrb[0].mxu0
    %v881 = vpop.f32.mrb[0].mxu0
    %882 = vdwg.mxu0
    %883 = vmatprep.subr.bf16.mxu0 0
    %884 = vmatpush1.bf16.msra.mxu0 %v731
    %885 = vmatprep.subr.bf16.mxu0 0
    %886 = vmatpush1.bf16.msra.mxu0 %v732
    %887 = vmatprep.subr.bf16.mxu0 0
    %888 = vmatpush1.bf16.msra.mxu0 %v733
    %889 = vmatprep.subr.bf16.mxu0 0
    %890 = vmatpush1.bf16.msra.mxu0 %v734
    %891 = vmatprep.subr.bf16.mxu0 0
    %892 = vmatpush1.bf16.msra.mxu0 %v735
    %893 = vmatprep.subr.bf16.mxu0 0
    %894 = vmatpush1.bf16.msra.mxu0 %v736
    %895 = vmatprep.subr.bf16.mxu0 0
    %896 = vmatpush1.bf16.msra.mxu0 %v737
    %897 = vmatprep.subr.bf16.mxu0 0
    %898 = vmatpush1.bf16.msra.mxu0 %v738
    %899 = vmatprep.subr.bf16.mxu0 0
    %900 = vmatpush1.bf16.msra.mxu0 %v739
    %901 = vmatprep.subr.bf16.mxu0 0
    %902 = vmatpush1.bf16.msra.mxu0 %v740
    %903 = vmatprep.subr.bf16.mxu0 0
    %904 = vmatpush1.bf16.msra.mxu0 %v741
    %905 = vmatprep.subr.bf16.mxu0 0
    %906 = vmatpush1.bf16.msra.mxu0 %v742
    %907 = vmatprep.subr.bf16.mxu0 0
    %908 = vmatpush1.bf16.msra.mxu0 %v743
    %909 = vmatprep.subr.bf16.mxu0 0
    %910 = vmatpush1.bf16.msra.mxu0 %v744
    %911 = vmatprep.subr.bf16.mxu0 0
    %912 = vmatpush1.bf16.msra.mxu0 %v745
    %913 = vmatprep.subr.bf16.mxu0 0
    %914 = vmatpush1.bf16.msra.mxu0 %v746
    %915 = vmatprep.mubr.bf16.mxu0 %v320
    %916 = vmatmul.mubr.bf16.gmra.mrb[0].mxu0 %v319
    %v917 = vpop.f32.mrb[0].mxu0
    %v918 = vadd.f32 %v878, %v917
    %v919 = vpop.f32.mrb[0].mxu0
    %v920 = vpop.f32.mrb[0].mxu0
    %v921 = vpop.f32.mrb[0].mxu0
    %922 = vdwg.mxu0
    %923 = vmatprep.subr.bf16.mxu0 0
    %924 = vmatpush1.bf16.msra.mxu0 %v747
    %925 = vmatprep.subr.bf16.mxu0 0
    %926 = vmatpush1.bf16.msra.mxu0 %v748
    %927 = vmatprep.subr.bf16.mxu0 0
    %928 = vmatpush1.bf16.msra.mxu0 %v749
    %929 = vmatprep.subr.bf16.mxu0 0
    %930 = vmatpush1.bf16.msra.mxu0 %v750
    %931 = vmatprep.subr.bf16.mxu0 0
    %932 = vmatpush1.bf16.msra.mxu0 %v751
    %933 = vmatprep.subr.bf16.mxu0 0
    %934 = vmatpush1.bf16.msra.mxu0 %v752
    %935 = vmatprep.subr.bf16.mxu0 0
    %936 = vmatpush1.bf16.msra.mxu0 %v753
    %937 = vmatprep.subr.bf16.mxu0 0
    %938 = vmatpush1.bf16.msra.mxu0 %v754
    %939 = vmatprep.subr.bf16.mxu0 0
    %940 = vmatpush1.bf16.msra.mxu0 %v755
    %941 = vmatprep.subr.bf16.mxu0 0
    %942 = vmatpush1.bf16.msra.mxu0 %v756
    %943 = vmatprep.subr.bf16.mxu0 0
    %944 = vmatpush1.bf16.msra.mxu0 %v757
    %945 = vmatprep.subr.bf16.mxu0 0
    %946 = vmatpush1.bf16.msra.mxu0 %v758
    %947 = vmatprep.subr.bf16.mxu0 0
    %948 = vmatpush1.bf16.msra.mxu0 %v759
    %949 = vmatprep.subr.bf16.mxu0 0
    %950 = vmatpush1.bf16.msra.mxu0 %v760
    %951 = vmatprep.subr.bf16.mxu0 0
    %952 = vmatpush1.bf16.msra.mxu0 %v761
    %953 = vmatprep.subr.bf16.mxu0 0
    %954 = vmatpush1.bf16.msra.mxu0 %v762
    %955 = vmatprep.mubr.bf16.mxu0 %v322
    %956 = vmatmul.mubr.bf16.gmra.mrb[0].mxu0 %v321
    %v957 = vpop.f32.mrb[0].mxu0
    %v958 = vadd.f32 %v918, %v957
    %v959 = vpop.f32.mrb[0].mxu0
    %v960 = vpop.f32.mrb[0].mxu0
    %v961 = vpop.f32.mrb[0].mxu0
    %962 = vdwg.mxu0
    %963 = vmatprep.subr.bf16.mxu0 0
    %964 = vmatpush1.bf16.msra.mxu0 %v763
    %965 = vmatprep.subr.bf16.mxu0 0
    %966 = vmatpush1.bf16.msra.mxu0 %v764
    %967 = vmatprep.subr.bf16.mxu0 0
    %968 = vmatpush1.bf16.msra.mxu0 %v765
    %969 = vmatprep.subr.bf16.mxu0 0
    %970 = vmatpush1.bf16.msra.mxu0 %v766
    %971 = vmatprep.subr.bf16.mxu0 0
    %972 = vmatpush1.bf16.msra.mxu0 %v767
    %973 = vmatprep.subr.bf16.mxu0 0
    %974 = vmatpush1.bf16.msra.mxu0 %v768
    %975 = vmatprep.subr.bf16.mxu0 0
    %976 = vmatpush1.bf16.msra.mxu0 %v769
    %977 = vmatprep.subr.bf16.mxu0 0
    %978 = vmatpush1.bf16.msra.mxu0 %v770
    %979 = vmatprep.subr.bf16.mxu0 0
    %980 = vmatpush1.bf16.msra.mxu0 %v771
    %981 = vmatprep.subr.bf16.mxu0 0
    %982 = vmatpush1.bf16.msra.mxu0 %v772
    %983 = vmatprep.subr.bf16.mxu0 0
    %984 = vmatpush1.bf16.msra.mxu0 %v773
    %985 = vmatprep.subr.bf16.mxu0 0
    %986 = vmatpush1.bf16.msra.mxu0 %v774
    %987 = vmatprep.subr.bf16.mxu0 0
    %988 = vmatpush1.bf16.msra.mxu0 %v775
    %989 = vmatprep.subr.bf16.mxu0 0
    %990 = vmatpush1.bf16.msra.mxu0 %v776
    %991 = vmatprep.subr.bf16.mxu0 0
    %992 = vmatpush1.bf16.msra.mxu0 %v777
    %993 = vmatprep.subr.bf16.mxu0 0
    %994 = vmatpush1.bf16.msra.mxu0 %v778
    %995 = vmatprep.mubr.bf16.mxu0 %v324
    %996 = vmatmul.mubr.bf16.gmra.mrb[0].mxu0 %v323
    %v997 = vpop.f32.mrb[0].mxu0
    %v998 = vadd.f32 %v958, %v997
    %v999 = vpop.f32.mrb[0].mxu0
    %v1000 = vpop.f32.mrb[0].mxu0
    %v1001 = vpop.f32.mrb[0].mxu0
    %1002 = vdwg.mxu0
    %v1003 = vtanh.pop %v998
    %v1004 = vpack.c.bf16 %v270, %v270
    %v1005 = vpack.c.bf16 %v1003, %v1003
    %v1006 = vld [vmem:[#allocation5] sm:$0xf]
    %v1007 = vld [vmem:[#allocation5 + $0x4] sm:$0xf]
    %v1008 = vld [vmem:[#allocation5 + $0x8] sm:$0xf]
    %v1009 = vld [vmem:[#allocation5 + $0xc] sm:$0xf]
    %v1010 = vld [vmem:[#allocation5 + $0x10] sm:$0xf]
    %v1011 = vld [vmem:[#allocation5 + $0x14] sm:$0xf]
    %v1012 = vld [vmem:[#allocation5 + $0x18] sm:$0xf]
    %v1013 = vld [vmem:[#allocation5 + $0x1c] sm:$0xf]
    %v1014 = vld [vmem:[#allocation5 + $0x20] sm:$0xf]
    %v1015 = vld [vmem:[#allocation5 + $0x24] sm:$0xf]
    %v1016 = vld [vmem:[#allocation5 + $0x28] sm:$0xf]
    %v1017 = vld [vmem:[#allocation5 + $0x2c] sm:$0xf]
    %v1018 = vld [vmem:[#allocation5 + $0x30] sm:$0xf]
    %v1019 = vld [vmem:[#allocation5 + $0x34] sm:$0xf]
    %v1020 = vld [vmem:[#allocation5 + $0x38] sm:$0xf]
    %v1021 = vld [vmem:[#allocation5 + $0x3c] sm:$0xf]
    %v1022 = vld [vmem:[#allocation5 + $0x40] sm:$0xf]
    %v1023 = vld [vmem:[#allocation5 + $0x44] sm:$0xf]
    %v1024 = vld [vmem:[#allocation5 + $0x48] sm:$0xf]
    %v1025 = vld [vmem:[#allocation5 + $0x4c] sm:$0xf]
    %v1026 = vld [vmem:[#allocation5 + $0x50] sm:$0xf]
    %v1027 = vld [vmem:[#allocation5 + $0x54] sm:$0xf]
    %v1028 = vld [vmem:[#allocation5 + $0x58] sm:$0xf]
    %v1029 = vld [vmem:[#allocation5 + $0x5c] sm:$0xf]
    %v1030 = vld [vmem:[#allocation5 + $0x60] sm:$0xf]
    %v1031 = vld [vmem:[#allocation5 + $0x64] sm:$0xf]
    %v1032 = vld [vmem:[#allocation5 + $0x68] sm:$0xf]
    %v1033 = vld [vmem:[#allocation5 + $0x6c] sm:$0xf]
    %v1034 = vld [vmem:[#allocation5 + $0x70] sm:$0xf]
    %v1035 = vld [vmem:[#allocation5 + $0x74] sm:$0xf]
    %v1036 = vld [vmem:[#allocation5 + $0x78] sm:$0xf]
    %v1037 = vld [vmem:[#allocation5 + $0x7c] sm:$0xf]
    %v1039 = vlaneseq
    %v1040 = vshrl.u32 %v1039, 7
    %v1041 = vsub.s32 0, %v1040
    %v1042 = vrot.slane %v83, %v1041
    %v1076 = vunpack.c.l.b16 %v1006
    %v1077 = vunpack.c.l.b16 %v1007
    %v1078 = vunpack.c.l.b16 %v1008
    %v1079 = vunpack.c.l.b16 %v1009
    %v1080 = vunpack.c.l.b16 %v1010
    %v1081 = vunpack.c.l.b16 %v1011
    %v1082 = vunpack.c.l.b16 %v1012
    %v1083 = vunpack.c.l.b16 %v1013
    %v1084 = vunpack.c.l.b16 %v1014
    %v1085 = vunpack.c.l.b16 %v1015
    %v1086 = vunpack.c.l.b16 %v1016
    %v1087 = vunpack.c.l.b16 %v1017
    %v1088 = vunpack.c.l.b16 %v1018
    %v1089 = vunpack.c.l.b16 %v1019
    %v1090 = vunpack.c.l.b16 %v1020
    %v1091 = vunpack.c.l.b16 %v1021
    %v1092 = vunpack.c.l.b16 %v1022
    %v1093 = vunpack.c.l.b16 %v1023
    %v1094 = vunpack.c.l.b16 %v1024
    %v1095 = vunpack.c.l.b16 %v1025
    %v1096 = vunpack.c.l.b16 %v1026
    %v1097 = vunpack.c.l.b16 %v1027
    %v1098 = vunpack.c.l.b16 %v1028
    %v1099 = vunpack.c.l.b16 %v1029
    %v1100 = vunpack.c.l.b16 %v1030
    %v1101 = vunpack.c.l.b16 %v1031
    %v1102 = vunpack.c.l.b16 %v1032
    %v1103 = vunpack.c.l.b16 %v1033
    %v1104 = vunpack.c.l.b16 %v1034
    %v1105 = vunpack.c.l.b16 %v1035
    %v1106 = vunpack.c.l.b16 %v1036
    %v1107 = vunpack.c.l.b16 %v1037
    %v1108 = vpack.c.b16 %v1077, %v1076
    %v1109 = vpack.c.b16 %v1079, %v1078
    %v1110 = vpack.c.b16 %v1081, %v1080
    %v1111 = vpack.c.b16 %v1083, %v1082
    %v1112 = vpack.c.b16 %v1085, %v1084
    %v1113 = vpack.c.b16 %v1087, %v1086
    %v1114 = vpack.c.b16 %v1089, %v1088
    %v1115 = vpack.c.b16 %v1091, %v1090
    %v1116 = vpack.c.b16 %v1093, %v1092
    %v1117 = vpack.c.b16 %v1095, %v1094
    %v1118 = vpack.c.b16 %v1097, %v1096
    %v1119 = vpack.c.b16 %v1099, %v1098
    %v1120 = vpack.c.b16 %v1101, %v1100
    %v1121 = vpack.c.b16 %v1103, %v1102
    %v1122 = vpack.c.b16 %v1105, %v1104
    %v1123 = vpack.c.b16 %v1107, %v1106
    %1140 = vmatprep.subr.bf16.mxu0 0
    %1141 = vmatpush1.bf16.msra.mxu0 %v1108
    %1142 = vmatprep.subr.bf16.mxu0 0
    %1143 = vmatpush1.bf16.msra.mxu0 %v1109
    %1144 = vmatprep.subr.bf16.mxu0 0
    %1145 = vmatpush1.bf16.msra.mxu0 %v1110
    %1146 = vmatprep.subr.bf16.mxu0 0
    %1147 = vmatpush1.bf16.msra.mxu0 %v1111
    %1148 = vmatprep.subr.bf16.mxu0 0
    %1149 = vmatpush1.bf16.msra.mxu0 %v1112
    %1150 = vmatprep.subr.bf16.mxu0 0
    %1151 = vmatpush1.bf16.msra.mxu0 %v1113
    %1152 = vmatprep.subr.bf16.mxu0 0
    %1153 = vmatpush1.bf16.msra.mxu0 %v1114
    %1154 = vmatprep.subr.bf16.mxu0 0
    %1155 = vmatpush1.bf16.msra.mxu0 %v1115
    %1156 = vmatprep.subr.bf16.mxu0 0
    %1157 = vmatpush1.bf16.msra.mxu0 %v1116
    %1158 = vmatprep.subr.bf16.mxu0 0
    %1159 = vmatpush1.bf16.msra.mxu0 %v1117
    %1160 = vmatprep.subr.bf16.mxu0 0
    %1161 = vmatpush1.bf16.msra.mxu0 %v1118
    %1162 = vmatprep.subr.bf16.mxu0 0
    %1163 = vmatpush1.bf16.msra.mxu0 %v1119
    %1164 = vmatprep.subr.bf16.mxu0 0
    %1165 = vmatpush1.bf16.msra.mxu0 %v1120
    %1166 = vmatprep.subr.bf16.mxu0 0
    %1167 = vmatpush1.bf16.msra.mxu0 %v1121
    %1168 = vmatprep.subr.bf16.mxu0 0
    %1169 = vmatpush1.bf16.msra.mxu0 %v1122
    %1170 = vmatprep.subr.bf16.mxu0 0
    %1171 = vmatpush1.bf16.msra.mxu0 %v1123
    %1172 = vmatprep.mubr.bf16.mxu0 %v1005
    %1173 = vmatmul.mubr.bf16.gmra.mrb[0].mxu0 %v1004
    %v1174 = vpop.f32.mrb[0].mxu0
    %v1175 = vadd.f32 %v1042, %v1174
    %v1176 = vpop.f32.mrb[0].mxu0
    %v1177 = vpop.f32.mrb[0].mxu0
    %v1178 = vpop.f32.mrb[0].mxu0
    %1179 = vdwg.mxu0
    %v1180 = vtanh.pop %v1175
    %v1181 = vpack.c.bf16 %v1180, %v1180
    %v1182 = vld [vmem:[%s7] sm:$0xf]
    %v1183 = vld [vmem:[%s7 + $0x4] sm:$0xf]
    %v1184 = vld [vmem:[%s7 + $0x8] sm:$0xf]
    %v1185 = vld [vmem:[%s7 + $0xc] sm:$0xf]
    %v1186 = vld [vmem:[%s7 + $0x10] sm:$0xf]
    %v1187 = vld [vmem:[%s7 + $0x14] sm:$0xf]
    %v1188 = vld [vmem:[%s7 + $0x18] sm:$0xf]
    %v1189 = vld [vmem:[%s7 + $0x1c] sm:$0xf]
    %v1190 = vld [vmem:[%s7 + $0x20] sm:$0xf]
    %v1191 = vld [vmem:[%s7 + $0x24] sm:$0xf]
    %v1192 = vld [vmem:[%s7 + $0x28] sm:$0xf]
    %v1193 = vld [vmem:[%s7 + $0x2c] sm:$0xf]
    %v1194 = vld [vmem:[%s7 + $0x30] sm:$0xf]
    %v1195 = vld [vmem:[%s7 + $0x34] sm:$0xf]
    %v1196 = vld [vmem:[%s7 + $0x38] sm:$0xf]
    %v1197 = vld [vmem:[%s7 + $0x3c] sm:$0xf]
    %v1214 = vunpack.c.l.b16 %v1182
    %v1215 = vunpack.c.l.b16 %v1183
    %v1216 = vunpack.c.l.b16 %v1184
    %v1217 = vunpack.c.l.b16 %v1185
    %v1218 = vunpack.c.l.b16 %v1186
    %v1219 = vunpack.c.l.b16 %v1187
    %v1220 = vunpack.c.l.b16 %v1188
    %v1221 = vunpack.c.l.b16 %v1189
    %v1222 = vunpack.c.l.b16 %v1190
    %v1223 = vunpack.c.l.b16 %v1191
    %v1224 = vunpack.c.l.b16 %v1192
    %v1225 = vunpack.c.l.b16 %v1193
    %v1226 = vunpack.c.l.b16 %v1194
    %v1227 = vunpack.c.l.b16 %v1195
    %v1228 = vunpack.c.l.b16 %v1196
    %v1229 = vunpack.c.l.b16 %v1197
    %v1230 = vpack.c.b16 %v1215, %v1214
    %v1231 = vpack.c.b16 %v1217, %v1216
    %v1232 = vpack.c.b16 %v1219, %v1218
    %v1233 = vpack.c.b16 %v1221, %v1220
    %v1234 = vpack.c.b16 %v1223, %v1222
    %v1235 = vpack.c.b16 %v1225, %v1224
    %v1236 = vpack.c.b16 %v1227, %v1226
    %v1237 = vpack.c.b16 %v1229, %v1228
    %1246 = vmatprep.subr.bf16.mxu0 0
    %1247 = vmatpush1.bf16.msra.mxu0 %v1230
    %1248 = vmatprep.subr.bf16.mxu0 0
    %1249 = vmatpush1.bf16.msra.mxu0 %v1231
    %1250 = vmatprep.subr.bf16.mxu0 0
    %1251 = vmatpush1.bf16.msra.mxu0 %v1232
    %1252 = vmatprep.subr.bf16.mxu0 0
    %1253 = vmatpush1.bf16.msra.mxu0 %v1233
    %1254 = vmatprep.subr.bf16.mxu0 0
    %1255 = vmatpush1.bf16.msra.mxu0 %v1234
    %1256 = vmatprep.subr.bf16.mxu0 0
    %1257 = vmatpush1.bf16.msra.mxu0 %v1235
    %1258 = vmatprep.subr.bf16.mxu0 0
    %1259 = vmatpush1.bf16.msra.mxu0 %v1236
    %1260 = vmatprep.subr.bf16.mxu0 0
    %1261 = vmatpush1.bf16.msra.mxu0 %v1237
    %1262 = vmatprep.subr.bf16.mxu0 0
    %1263 = vmatpush1.bf16.msra.mxu0 0
    %1264 = vmatprep.subr.bf16.mxu0 0
    %1265 = vmatpush1.bf16.msra.mxu0 0
    %1266 = vmatprep.subr.bf16.mxu0 0
    %1267 = vmatpush1.bf16.msra.mxu0 0
    %1268 = vmatprep.subr.bf16.mxu0 0
    %1269 = vmatpush1.bf16.msra.mxu0 0
    %1270 = vmatprep.subr.bf16.mxu0 0
    %1271 = vmatpush1.bf16.msra.mxu0 0
    %1272 = vmatprep.subr.bf16.mxu0 0
    %1273 = vmatpush1.bf16.msra.mxu0 0
    %1274 = vmatprep.subr.bf16.mxu0 0
    %1275 = vmatpush1.bf16.msra.mxu0 0
    %1276 = vmatprep.subr.bf16.mxu0 0
    %1277 = vmatpush1.bf16.msra.mxu0 0
    %1278 = vmatprep.mubr.bf16.mxu0 0
    %1279 = vmatmul.mubr.bf16.gmra.mrb[0].mxu0 %v1181
    %v1280 = vpop.f32.mrb[0].mxu0
    %v1281 = vadd.f32 0.0, %v1280
    %v1282 = vpop.f32.mrb[0].mxu0
    %v1283 = vpop.f32.mrb[0].mxu0
    %v1284 = vpop.f32.mrb[0].mxu0
    %1285 = vdwg.mxu0
    %vm1286 = vcmask 123904
    %v1287 = vsel %vm1286, %v1281, -inf
    %1288 = vmax.xlane.f32.xlu0 %v1287
    %v1289 = vpop.xlane.xlu0 %1288
    %v1290 = vsub.f32 %v1281, %v1289
    %v1291 = vmul.f32 %v1290, 1.442695
    %v1292 = vpow.pop %v1291
    %v1293 = vsel %vm1286, %v1292, 0.0
    %1294 = vadd.xlane.f32.xlu0 %v1293
    %v1295 = vpop.xlane.xlu0 %1294
    %v1296 = vrcp.pop %v1295
    %v1297 = vmul.f32 %v1292, %v1296
    %v1298 = vld [vmem:[%s6] sm:$0xf]
    %v1299 = vld [vmem:[%s6 + $0x4] sm:$0xf]
    %v1300 = vunpack.c.l.bf16 %v1298
    %v1301 = vunpack.c.l.bf16 %v1299
    %vm1302 = vcmask 130048
    %v1304 = vsel %vm1302, %v1297, 0
    %1306 = vmatprep.subr.mxu0 0.0
    %1307 = vmatpush1.msra.mxu0 %v1300
    %1308 = vmatprep.subr.mxu0 0.0
    %1309 = vmatpush1.msra.mxu0 %v1301
    %1310 = vmatprep.subr.mxu0 0.0
    %1311 = vmatpush1.msra.mxu0 0.0
    %1312 = vmatprep.subr.mxu0 0.0
    %1313 = vmatpush1.msra.mxu0 0.0
    %1314 = vmatprep.subr.mxu0 0.0
    %1315 = vmatpush1.msra.mxu0 0.0
    %1316 = vmatprep.subr.mxu0 0.0
    %1317 = vmatpush1.msra.mxu0 0.0
    %1318 = vmatprep.subr.mxu0 0.0
    %1319 = vmatpush1.msra.mxu0 0.0
    %1320 = vmatprep.subr.mxu0 0.0
    %1321 = vmatpush1.msra.mxu0 0.0
    %1322 = vmatprep.subr.mxu0 0.0
    %1323 = vmatpush1.msra.mxu0 0.0
    %1324 = vmatprep.subr.mxu0 0.0
    %1325 = vmatpush1.msra.mxu0 0.0
    %1326 = vmatprep.subr.mxu0 0.0
    %1327 = vmatpush1.msra.mxu0 0.0
    %1328 = vmatprep.subr.mxu0 0.0
    %1329 = vmatpush1.msra.mxu0 0.0
    %1330 = vmatprep.subr.mxu0 0.0
    %1331 = vmatpush1.msra.mxu0 0.0
    %1332 = vmatprep.subr.mxu0 0.0
    %1333 = vmatpush1.msra.mxu0 0.0
    %1334 = vmatprep.subr.mxu0 0.0
    %1335 = vmatpush1.msra.mxu0 0.0
    %1336 = vmatprep.subr.mxu0 0.0
    %1337 = vmatpush1.msra.mxu0 0.0
    %1338 = vmatprep.subr.mxu0 0.0
    %1339 = vmatpush1.msra.mxu0 0.0
    %1340 = vmatprep.subr.mxu0 0.0
    %1341 = vmatpush1.msra.mxu0 0.0
    %1342 = vmatprep.subr.mxu0 0.0
    %1343 = vmatpush1.msra.mxu0 0.0
    %1344 = vmatprep.subr.mxu0 0.0
    %1345 = vmatpush1.msra.mxu0 0.0
    %1346 = vmatprep.subr.mxu0 0.0
    %1347 = vmatpush1.msra.mxu0 0.0
    %1348 = vmatprep.subr.mxu0 0.0
    %1349 = vmatpush1.msra.mxu0 0.0
    %1350 = vmatprep.subr.mxu0 0.0
    %1351 = vmatpush1.msra.mxu0 0.0
    %1352 = vmatprep.subr.mxu0 0.0
    %1353 = vmatpush1.msra.mxu0 0.0
    %1354 = vmatprep.subr.mxu0 0.0
    %1355 = vmatpush1.msra.mxu0 0.0
    %1356 = vmatprep.subr.mxu0 0.0
    %1357 = vmatpush1.msra.mxu0 0.0
    %1358 = vmatprep.subr.mxu0 0.0
    %1359 = vmatpush1.msra.mxu0 0.0
    %1360 = vmatprep.subr.mxu0 0.0
    %1361 = vmatpush1.msra.mxu0 0.0
    %1362 = vmatprep.subr.mxu0 0.0
    %1363 = vmatpush1.msra.mxu0 0.0
    %1364 = vmatprep.subr.mxu0 0.0
    %1365 = vmatpush1.msra.mxu0 0.0
    %1366 = vmatprep.subr.mxu0 0.0
    %1367 = vmatpush1.msra.mxu0 0.0
    %1368 = vmatprep.subr.mxu0 0.0
    %1369 = vmatpush1.msra.mxu0 0.0
    %1370 = vmatprep.mubr.f32.mxu0 0.0
    %1371 = vmatmul.mubr.f32.gmra.mrb[0].mxu0 %v1304
    %v1372 = vpop.f32.mrb[0].mxu0
    %v1373 = vadd.f32 0.0, %v1372
    %v1374 = vpop.f32.mrb[0].mxu0
    %1375 = vdwg.mxu0
    %v1376 = vpack.c.bf16 %v1373, %v1373
    %v1377 = vld [vmem:[%s8] sm:$0xf]
    %v1378 = vld [vmem:[%s8 + $0x4] sm:$0xf]
    %v1379 = vld [vmem:[%s8 + $0x8] sm:$0xf]
    %v1380 = vld [vmem:[%s8 + $0xc] sm:$0xf]
    %v1381 = vld [vmem:[%s8 + $0x10] sm:$0xf]
    %v1382 = vld [vmem:[%s8 + $0x14] sm:$0xf]
    %v1383 = vld [vmem:[%s8 + $0x18] sm:$0xf]
    %v1384 = vld [vmem:[%s8 + $0x1c] sm:$0xf]
    %v1385 = vld [vmem:[%s8 + $0x20] sm:$0xf]
    %v1386 = vld [vmem:[%s8 + $0x24] sm:$0xf]
    %v1387 = vld [vmem:[%s8 + $0x28] sm:$0xf]
    %v1388 = vld [vmem:[%s8 + $0x2c] sm:$0xf]
    %v1389 = vld [vmem:[%s8 + $0x30] sm:$0xf]
    %v1390 = vld [vmem:[%s8 + $0x34] sm:$0xf]
    %v1391 = vld [vmem:[%s8 + $0x38] sm:$0xf]
    %v1392 = vld [vmem:[%s8 + $0x3c] sm:$0xf]
    %v1393 = vld [vmem:[%s8 + $0x40] sm:$0xf]
    %v1394 = vld [vmem:[%s8 + $0x44] sm:$0xf]
    %v1395 = vld [vmem:[%s8 + $0x48] sm:$0xf]
    %v1396 = vld [vmem:[%s8 + $0x4c] sm:$0xf]
    %v1397 = vld [vmem:[%s8 + $0x50] sm:$0xf]
    %v1398 = vld [vmem:[%s8 + $0x54] sm:$0xf]
    %v1399 = vld [vmem:[%s8 + $0x58] sm:$0xf]
    %v1400 = vld [vmem:[%s8 + $0x5c] sm:$0xf]
    %v1401 = vld [vmem:[%s8 + $0x60] sm:$0xf]
    %v1402 = vld [vmem:[%s8 + $0x64] sm:$0xf]
    %v1403 = vld [vmem:[%s8 + $0x68] sm:$0xf]
    %v1404 = vld [vmem:[%s8 + $0x6c] sm:$0xf]
    %v1405 = vld [vmem:[%s8 + $0x70] sm:$0xf]
    %v1406 = vld [vmem:[%s8 + $0x74] sm:$0xf]
    %v1407 = vld [vmem:[%s8 + $0x78] sm:$0xf]
    %v1408 = vld [vmem:[%s8 + $0x7c] sm:$0xf]
    %v1409 = vld [vmem:[%s8 + $0x80] sm:$0xf]
    %v1410 = vld [vmem:[%s8 + $0x84] sm:$0xf]
    %v1411 = vld [vmem:[%s8 + $0x88] sm:$0xf]
    %v1412 = vld [vmem:[%s8 + $0x8c] sm:$0xf]
    %v1413 = vld [vmem:[%s8 + $0x90] sm:$0xf]
    %v1414 = vld [vmem:[%s8 + $0x94] sm:$0xf]
    %v1415 = vld [vmem:[%s8 + $0x98] sm:$0xf]
    %v1416 = vld [vmem:[%s8 + $0x9c] sm:$0xf]
    %v1417 = vld [vmem:[%s8 + $0xa0] sm:$0xf]
    %v1418 = vld [vmem:[%s8 + $0xa4] sm:$0xf]
    %v1419 = vld [vmem:[%s8 + $0xa8] sm:$0xf]
    %v1420 = vld [vmem:[%s8 + $0xac] sm:$0xf]
    %v1421 = vld [vmem:[%s8 + $0xb0] sm:$0xf]
    %v1422 = vld [vmem:[%s8 + $0xb4] sm:$0xf]
    %v1423 = vld [vmem:[%s8 + $0xb8] sm:$0xf]
    %v1424 = vld [vmem:[%s8 + $0xbc] sm:$0xf]
    %v1425 = vld [vmem:[%s8 + $0xc0] sm:$0xf]
    %v1426 = vld [vmem:[%s8 + $0xc4] sm:$0xf]
    %v1427 = vld [vmem:[%s8 + $0xc8] sm:$0xf]
    %v1428 = vld [vmem:[%s8 + $0xcc] sm:$0xf]
    %v1429 = vld [vmem:[%s8 + $0xd0] sm:$0xf]
    %v1430 = vld [vmem:[%s8 + $0xd4] sm:$0xf]
    %v1431 = vld [vmem:[%s8 + $0xd8] sm:$0xf]
    %v1432 = vld [vmem:[%s8 + $0xdc] sm:$0xf]
    %v1433 = vld [vmem:[%s8 + $0xe0] sm:$0xf]
    %v1434 = vld [vmem:[%s8 + $0xe4] sm:$0xf]
    %v1435 = vld [vmem:[%s8 + $0xe8] sm:$0xf]
    %v1436 = vld [vmem:[%s8 + $0xec] sm:$0xf]
    %v1437 = vld [vmem:[%s8 + $0xf0] sm:$0xf]
    %v1438 = vld [vmem:[%s8 + $0xf4] sm:$0xf]
    %v1439 = vld [vmem:[%s8 + $0xf8] sm:$0xf]
    %v1440 = vld [vmem:[%s8 + $0xfc] sm:$0xf]
    %v1442 = vlaneseq
    %v1443 = vshrl.u32 %v1442, 7
    %v1444 = vsub.s32 0, %v1443
    %v1445 = vrot.slane %v84, %v1444
    %v1511 = vunpack.c.l.b16 %v1377
    %v1512 = vunpack.c.l.b16 %v1378
    %v1513 = vunpack.c.l.b16 %v1379
    %v1514 = vunpack.c.l.b16 %v1380
    %v1515 = vunpack.c.l.b16 %v1381
    %v1516 = vunpack.c.l.b16 %v1382
    %v1517 = vunpack.c.l.b16 %v1383
    %v1518 = vunpack.c.l.b16 %v1384
    %v1519 = vunpack.c.l.b16 %v1385
    %v1520 = vunpack.c.l.b16 %v1386
    %v1521 = vunpack.c.l.b16 %v1387
    %v1522 = vunpack.c.l.b16 %v1388
    %v1523 = vunpack.c.l.b16 %v1389
    %v1524 = vunpack.c.l.b16 %v1390
    %v1525 = vunpack.c.l.b16 %v1391
    %v1526 = vunpack.c.l.b16 %v1392
    %v1527 = vunpack.c.l.b16 %v1393
    %v1528 = vunpack.c.l.b16 %v1394
    %v1529 = vunpack.c.l.b16 %v1395
    %v1530 = vunpack.c.l.b16 %v1396
    %v1531 = vunpack.c.l.b16 %v1397
    %v1532 = vunpack.c.l.b16 %v1398
    %v1533 = vunpack.c.l.b16 %v1399
    %v1534 = vunpack.c.l.b16 %v1400
    %v1535 = vunpack.c.l.b16 %v1401
    %v1536 = vunpack.c.l.b16 %v1402
    %v1537 = vunpack.c.l.b16 %v1403
    %v1538 = vunpack.c.l.b16 %v1404
    %v1539 = vunpack.c.l.b16 %v1405
    %v1540 = vunpack.c.l.b16 %v1406
    %v1541 = vunpack.c.l.b16 %v1407
    %v1542 = vunpack.c.l.b16 %v1408
    %v1543 = vunpack.c.l.b16 %v1409
    %v1544 = vunpack.c.l.b16 %v1410
    %v1545 = vunpack.c.l.b16 %v1411
    %v1546 = vunpack.c.l.b16 %v1412
    %v1547 = vunpack.c.l.b16 %v1413
    %v1548 = vunpack.c.l.b16 %v1414
    %v1549 = vunpack.c.l.b16 %v1415
    %v1550 = vunpack.c.l.b16 %v1416
    %v1551 = vunpack.c.l.b16 %v1417
    %v1552 = vunpack.c.l.b16 %v1418
    %v1553 = vunpack.c.l.b16 %v1419
    %v1554 = vunpack.c.l.b16 %v1420
    %v1555 = vunpack.c.l.b16 %v1421
    %v1556 = vunpack.c.l.b16 %v1422
    %v1557 = vunpack.c.l.b16 %v1423
    %v1558 = vunpack.c.l.b16 %v1424
    %v1559 = vunpack.c.l.b16 %v1425
    %v1560 = vunpack.c.l.b16 %v1426
    %v1561 = vunpack.c.l.b16 %v1427
    %v1562 = vunpack.c.l.b16 %v1428
    %v1563 = vunpack.c.l.b16 %v1429
    %v1564 = vunpack.c.l.b16 %v1430
    %v1565 = vunpack.c.l.b16 %v1431
    %v1566 = vunpack.c.l.b16 %v1432
    %v1567 = vunpack.c.l.b16 %v1433
    %v1568 = vunpack.c.l.b16 %v1434
    %v1569 = vunpack.c.l.b16 %v1435
    %v1570 = vunpack.c.l.b16 %v1436
    %v1571 = vunpack.c.l.b16 %v1437
    %v1572 = vunpack.c.l.b16 %v1438
    %v1573 = vunpack.c.l.b16 %v1439
    %v1574 = vunpack.c.l.b16 %v1440
    %v1575 = vpack.c.b16 %v1512, %v1511
    %v1576 = vpack.c.b16 %v1514, %v1513
    %v1577 = vpack.c.b16 %v1516, %v1515
    %v1578 = vpack.c.b16 %v1518, %v1517
    %v1579 = vpack.c.b16 %v1520, %v1519
    %v1580 = vpack.c.b16 %v1522, %v1521
    %v1581 = vpack.c.b16 %v1524, %v1523
    %v1582 = vpack.c.b16 %v1526, %v1525
    %v1583 = vpack.c.b16 %v1528, %v1527
    %v1584 = vpack.c.b16 %v1530, %v1529
    %v1585 = vpack.c.b16 %v1532, %v1531
    %v1586 = vpack.c.b16 %v1534, %v1533
    %v1587 = vpack.c.b16 %v1536, %v1535
    %v1588 = vpack.c.b16 %v1538, %v1537
    %v1589 = vpack.c.b16 %v1540, %v1539
    %v1590 = vpack.c.b16 %v1542, %v1541
    %v1591 = vpack.c.b16 %v1544, %v1543
    %v1592 = vpack.c.b16 %v1546, %v1545
    %v1593 = vpack.c.b16 %v1548, %v1547
    %v1594 = vpack.c.b16 %v1550, %v1549
    %v1595 = vpack.c.b16 %v1552, %v1551
    %v1596 = vpack.c.b16 %v1554, %v1553
    %v1597 = vpack.c.b16 %v1556, %v1555
    %v1598 = vpack.c.b16 %v1558, %v1557
    %v1599 = vpack.c.b16 %v1560, %v1559
    %v1600 = vpack.c.b16 %v1562, %v1561
    %v1601 = vpack.c.b16 %v1564, %v1563
    %v1602 = vpack.c.b16 %v1566, %v1565
    %v1603 = vpack.c.b16 %v1568, %v1567
    %v1604 = vpack.c.b16 %v1570, %v1569
    %v1605 = vpack.c.b16 %v1572, %v1571
    %v1606 = vpack.c.b16 %v1574, %v1573
    %1639 = vmatprep.subr.bf16.mxu0 0
    %1640 = vmatpush1.bf16.msra.mxu0 %v1575
    %1641 = vmatprep.subr.bf16.mxu0 0
    %1642 = vmatpush1.bf16.msra.mxu0 %v1576
    %1643 = vmatprep.subr.bf16.mxu0 0
    %1644 = vmatpush1.bf16.msra.mxu0 %v1577
    %1645 = vmatprep.subr.bf16.mxu0 0
    %1646 = vmatpush1.bf16.msra.mxu0 %v1578
    %1647 = vmatprep.subr.bf16.mxu0 0
    %1648 = vmatpush1.bf16.msra.mxu0 %v1579
    %1649 = vmatprep.subr.bf16.mxu0 0
    %1650 = vmatpush1.bf16.msra.mxu0 %v1580
    %1651 = vmatprep.subr.bf16.mxu0 0
    %1652 = vmatpush1.bf16.msra.mxu0 %v1581
    %1653 = vmatprep.subr.bf16.mxu0 0
    %1654 = vmatpush1.bf16.msra.mxu0 %v1582
    %1655 = vmatprep.subr.bf16.mxu0 0
    %1656 = vmatpush1.bf16.msra.mxu0 %v1583
    %1657 = vmatprep.subr.bf16.mxu0 0
    %1658 = vmatpush1.bf16.msra.mxu0 %v1584
    %1659 = vmatprep.subr.bf16.mxu0 0
    %1660 = vmatpush1.bf16.msra.mxu0 %v1585
    %1661 = vmatprep.subr.bf16.mxu0 0
    %1662 = vmatpush1.bf16.msra.mxu0 %v1586
    %1663 = vmatprep.subr.bf16.mxu0 0
    %1664 = vmatpush1.bf16.msra.mxu0 %v1587
    %1665 = vmatprep.subr.bf16.mxu0 0
    %1666 = vmatpush1.bf16.msra.mxu0 %v1588
    %1667 = vmatprep.subr.bf16.mxu0 0
    %1668 = vmatpush1.bf16.msra.mxu0 %v1589
    %1669 = vmatprep.subr.bf16.mxu0 0
    %1670 = vmatpush1.bf16.msra.mxu0 %v1590
    %1671 = vmatprep.mubr.bf16.mxu0 %v1005
    %1672 = vmatmul.mubr.bf16.gmra.mrb[0].mxu0 %v1004
    %v1673 = vpop.f32.mrb[0].mxu0
    %v1674 = vadd.f32 %v1445, %v1673
    %v1675 = vpop.f32.mrb[0].mxu0
    %v1676 = vpop.f32.mrb[0].mxu0
    %v1677 = vpop.f32.mrb[0].mxu0
    %1678 = vdwg.mxu0
    %1679 = vmatprep.subr.bf16.mxu0 0
    %1680 = vmatpush1.bf16.msra.mxu0 %v1591
    %1681 = vmatprep.subr.bf16.mxu0 0
    %1682 = vmatpush1.bf16.msra.mxu0 %v1592
    %1683 = vmatprep.subr.bf16.mxu0 0
    %1684 = vmatpush1.bf16.msra.mxu0 %v1593
    %1685 = vmatprep.subr.bf16.mxu0 0
    %1686 = vmatpush1.bf16.msra.mxu0 %v1594
    %1687 = vmatprep.subr.bf16.mxu0 0
    %1688 = vmatpush1.bf16.msra.mxu0 %v1595
    %1689 = vmatprep.subr.bf16.mxu0 0
    %1690 = vmatpush1.bf16.msra.mxu0 %v1596
    %1691 = vmatprep.subr.bf16.mxu0 0
    %1692 = vmatpush1.bf16.msra.mxu0 %v1597
    %1693 = vmatprep.subr.bf16.mxu0 0
    %1694 = vmatpush1.bf16.msra.mxu0 %v1598
    %1695 = vmatprep.subr.bf16.mxu0 0
    %1696 = vmatpush1.bf16.msra.mxu0 %v1599
    %1697 = vmatprep.subr.bf16.mxu0 0
    %1698 = vmatpush1.bf16.msra.mxu0 %v1600
    %1699 = vmatprep.subr.bf16.mxu0 0
    %1700 = vmatpush1.bf16.msra.mxu0 %v1601
    %1701 = vmatprep.subr.bf16.mxu0 0
    %1702 = vmatpush1.bf16.msra.mxu0 %v1602
    %1703 = vmatprep.subr.bf16.mxu0 0
    %1704 = vmatpush1.bf16.msra.mxu0 %v1603
    %1705 = vmatprep.subr.bf16.mxu0 0
    %1706 = vmatpush1.bf16.msra.mxu0 %v1604
    %1707 = vmatprep.subr.bf16.mxu0 0
    %1708 = vmatpush1.bf16.msra.mxu0 %v1605
    %1709 = vmatprep.subr.bf16.mxu0 0
    %1710 = vmatpush1.bf16.msra.mxu0 %v1606
    %1711 = vmatprep.mubr.bf16.mxu0 %v1181
    %1712 = vmatmul.mubr.bf16.gmra.mrb[0].mxu0 %v1376
    %v1713 = vpop.f32.mrb[0].mxu0
    %v1714 = vadd.f32 %v1674, %v1713
    %v1715 = vpop.f32.mrb[0].mxu0
    %v1716 = vpop.f32.mrb[0].mxu0
    %v1717 = vpop.f32.mrb[0].mxu0
    %1718 = vdwg.mxu0
    %v1719 = vtanh.pop %v1714
    %v1720 = vpack.c.bf16 %v1719, %v1719
    %v1721 = vld [vmem:[#allocation7] sm:$0xff]
    %v1722 = vld [vmem:[#allocation7 + $0x8] sm:$0xff]
    %v1723 = vld [vmem:[#allocation7 + $0x10] sm:$0xff]
    %v1724 = vld [vmem:[#allocation7 + $0x18] sm:$0xff]
    %v1725 = vld [vmem:[#allocation7 + $0x20] sm:$0xff]
    %v1726 = vld [vmem:[#allocation7 + $0x28] sm:$0xff]
    %v1727 = vld [vmem:[#allocation7 + $0x30] sm:$0xff]
    %v1728 = vld [vmem:[#allocation7 + $0x38] sm:$0xff]
    %v1729 = vld [vmem:[#allocation7 + $0x40] sm:$0xff]
    %v1730 = vld [vmem:[#allocation7 + $0x48] sm:$0xff]
    %v1731 = vld [vmem:[#allocation7 + $0x50] sm:$0xff]
    %v1732 = vld [vmem:[#allocation7 + $0x58] sm:$0xff]
    %v1733 = vld [vmem:[#allocation7 + $0x60] sm:$0xff]
    %v1734 = vld [vmem:[#allocation7 + $0x68] sm:$0xff]
    %v1735 = vld [vmem:[#allocation7 + $0x70] sm:$0xff]
    %v1736 = vld [vmem:[#allocation7 + $0x78] sm:$0xff]
    %v1738 = vlaneseq
    %v1739 = vshrl.u32 %v1738, 7
    %v1740 = vsub.s32 0, %v1739
    %v1741 = vrot.slane %v85, %v1740
    %v1742 = vlaneseq
    %v1743 = vshrl.u32 %v1742, 7
    %v1744 = vsub.s32 1, %v1743
    %v1745 = vrot.slane %v85, %v1744
    %v1764 = vunpack.c.l.b16 %v1721
    %v1765 = vunpack.c.h.b16 %v1721
    %v1766 = vunpack.c.l.b16 %v1722
    %v1767 = vunpack.c.h.b16 %v1722
    %v1768 = vunpack.c.l.b16 %v1723
    %v1769 = vunpack.c.h.b16 %v1723
    %v1770 = vunpack.c.l.b16 %v1724
    %v1771 = vunpack.c.h.b16 %v1724
    %v1772 = vunpack.c.l.b16 %v1725
    %v1773 = vunpack.c.h.b16 %v1725
    %v1774 = vunpack.c.l.b16 %v1726
    %v1775 = vunpack.c.h.b16 %v1726
    %v1776 = vunpack.c.l.b16 %v1727
    %v1777 = vunpack.c.h.b16 %v1727
    %v1778 = vunpack.c.l.b16 %v1728
    %v1779 = vunpack.c.h.b16 %v1728
    %v1780 = vunpack.c.l.b16 %v1729
    %v1781 = vunpack.c.h.b16 %v1729
    %v1782 = vunpack.c.l.b16 %v1730
    %v1783 = vunpack.c.h.b16 %v1730
    %v1784 = vunpack.c.l.b16 %v1731
    %v1785 = vunpack.c.h.b16 %v1731
    %v1786 = vunpack.c.l.b16 %v1732
    %v1787 = vunpack.c.h.b16 %v1732
    %v1788 = vunpack.c.l.b16 %v1733
    %v1789 = vunpack.c.h.b16 %v1733
    %v1790 = vunpack.c.l.b16 %v1734
    %v1791 = vunpack.c.h.b16 %v1734
    %v1792 = vunpack.c.l.b16 %v1735
    %v1793 = vunpack.c.h.b16 %v1735
    %v1794 = vunpack.c.l.b16 %v1736
    %v1795 = vunpack.c.h.b16 %v1736
    %v1796 = vpack.c.b16 %v1766, %v1764
    %v1797 = vpack.c.b16 %v1767, %v1765
    %v1798 = vpack.c.b16 %v1770, %v1768
    %v1799 = vpack.c.b16 %v1771, %v1769
    %v1800 = vpack.c.b16 %v1774, %v1772
    %v1801 = vpack.c.b16 %v1775, %v1773
    %v1802 = vpack.c.b16 %v1778, %v1776
    %v1803 = vpack.c.b16 %v1779, %v1777
    %v1804 = vpack.c.b16 %v1782, %v1780
    %v1805 = vpack.c.b16 %v1783, %v1781
    %v1806 = vpack.c.b16 %v1786, %v1784
    %v1807 = vpack.c.b16 %v1787, %v1785
    %v1808 = vpack.c.b16 %v1790, %v1788
    %v1809 = vpack.c.b16 %v1791, %v1789
    %v1810 = vpack.c.b16 %v1794, %v1792
    %v1811 = vpack.c.b16 %v1795, %v1793
    %1828 = vmatprep.subr.bf16.mxu0 %v1797
    %1829 = vmatpush1.bf16.msra.mxu0 %v1796
    %1830 = vmatprep.subr.bf16.mxu0 %v1799
    %1831 = vmatpush1.bf16.msra.mxu0 %v1798
    %1832 = vmatprep.subr.bf16.mxu0 %v1801
    %1833 = vmatpush1.bf16.msra.mxu0 %v1800
    %1834 = vmatprep.subr.bf16.mxu0 %v1803
    %1835 = vmatpush1.bf16.msra.mxu0 %v1802
    %1836 = vmatprep.subr.bf16.mxu0 %v1805
    %1837 = vmatpush1.bf16.msra.mxu0 %v1804
    %1838 = vmatprep.subr.bf16.mxu0 %v1807
    %1839 = vmatpush1.bf16.msra.mxu0 %v1806
    %1840 = vmatprep.subr.bf16.mxu0 %v1809
    %1841 = vmatpush1.bf16.msra.mxu0 %v1808
    %1842 = vmatprep.subr.bf16.mxu0 %v1811
    %1843 = vmatpush1.bf16.msra.mxu0 %v1810
    %1844 = vmatprep.subr.bf16.mxu0 0
    %1845 = vmatpush1.bf16.msra.mxu0 0
    %1846 = vmatprep.subr.bf16.mxu0 0
    %1847 = vmatpush1.bf16.msra.mxu0 0
    %1848 = vmatprep.subr.bf16.mxu0 0
    %1849 = vmatpush1.bf16.msra.mxu0 0
    %1850 = vmatprep.subr.bf16.mxu0 0
    %1851 = vmatpush1.bf16.msra.mxu0 0
    %1852 = vmatprep.subr.bf16.mxu0 0
    %1853 = vmatpush1.bf16.msra.mxu0 0
    %1854 = vmatprep.subr.bf16.mxu0 0
    %1855 = vmatpush1.bf16.msra.mxu0 0
    %1856 = vmatprep.subr.bf16.mxu0 0
    %1857 = vmatpush1.bf16.msra.mxu0 0
    %1858 = vmatprep.subr.bf16.mxu0 0
    %1859 = vmatpush1.bf16.msra.mxu0 0
    %1860 = vmatprep.mubr.bf16.mxu0 0
    %1861 = vmatmul.mubr.bf16.gmra.mrb[0].mxu0 %v1720
    %v1862 = vpop.f32.mrb[0].mxu0
    %v1863 = vadd.f32 %v1741, %v1862
    %v1864 = vpop.f32.mrb[0].mxu0
    %v1865 = vadd.f32 %v1745, %v1864
    %v1866 = vpop.f32.mrb[0].mxu0
    %v1867 = vpop.f32.mrb[0].mxu0
    %1868 = vdwg.mxu0
    %v1871 = vcombine.low %v1863, %v1865
    %v1873 = vunpack.c.l.s4 1983009808
    %v1874 = vunpack.c.0.s8 %v1873
    %v1875 = vlaneseq
    %v1876 = vshrl.u32 %v1875, 7
    %v1877 = vsub.s32 %v1874, %v1876
    %v1878 = vrot.slane %v1871, %v1877
    %1880 = vst [vmem:[#allocation8] sm:$0xf] %v1878
    // Predicated region
    $region58: #{vlmrag_forward.1} parent=1 // pred_check
      _
    $region59: #{vlmrag_forward.1} parent=1 // pred_check_branch
      %1882 = sbr.rel (0) target = $region61
    $region60: #{vlmrag_forward.1} parent=1 // pred_region
      %s1884 = ssub.s32 64, 64
      %1885 = vsyncadd [#allocation4], %s1884
      %s1887 = sshll.u32 [#allocation8], 4
      %s1888 = int_to_ptr.vmem [resolvable:$true] %s1887
      %1890 = dma.vmem_to_hbm [thread:$0]  %s1888, 64, %s11, [#allocation4]
    $region61: #{vlmrag_forward.1} parent=1 // pred_fallthru
      _
    // Predicated region
    $region62: #{vlmrag_forward.1} parent=1 // pred_check
      _
    $region63: #{vlmrag_forward.1} parent=1 // pred_check_branch
      %1892 = sbr.rel (0) target = $region65
    $region64: #{vlmrag_forward.1} parent=1 // pred_region
      %1893 = dma.done [#allocation4], 64
    $region65: #{vlmrag_forward.1} parent=1 // pred_fallthru
      _
    %1894 = vsyncpa [#allocation3], 1
    %1895 = vsyncpa [#allocation6], 1
    %1896 = vsyncpa [#allocation4], 1

</llo_original>
